<compile_context>
chip_gen: v5e
topology: v5e:2x2
jax: 0.10.0
libtpu: 0.0.40
codegen_flags: <defaults>
</compile_context>

<pallas_src>
from functools import partial

import jax
import jax.numpy as jnp
import numpy as np
from jax import lax
from jax.experimental import pallas as pl
from jax.experimental.pallas import tpu as pltpu


# ---------------------------------------------------------------------------
# Fused Tree kernel (one batch-block of NB samples per grid step)
# ---------------------------------------------------------------------------

def _make_tree_kernel(H, has_proj):
    """Build the fused Tree kernel for spatial height H.

    The kernel sees NB samples flattened to M = NB*H rows in the lane-packed
    (row, W*Cout) layout, so every matmul runs with M MXU rows instead of 16.
    """

    def kernel(x_ref, w3_ref, w1_ref, b_ref, o_ref):
        a = x_ref[...]                                    # (M, W*Cout) f32
        M = a.shape[0]

        # Boundary masks hoisted once and reused by all four 3x3 convs.
        # Built from (row mod H) so samples inside the batch-block never
        # bleed into each other across the flattened sublane axis.
        y_in = lax.broadcasted_iota(jnp.int32, a.shape, 0) % H
        m_top = y_in > 0                                  # row y-1 exists
        m_bot = y_in < (H - 1)                            # row y+1 exists

        def conv3x3(act, w_idx, b_idx, res=None):
            # SAME 3x3 conv + folded BN (+ residual) + ReLU as ONE MXU matmul:
            # kh taps = two sublane rolls; kw taps, SAME padding along W and
            # the BN scale are pre-folded into the banded weight w3_ref[w_idx].
            up = jnp.where(m_top, pltpu.roll(act, shift=1, axis=0), 0.0)
            dn = jnp.where(m_bot, pltpu.roll(act, shift=M - 1, axis=0), 0.0)
            acat = jnp.concatenate([up, act, dn], axis=1).astype(jnp.bfloat16)
            y = jnp.dot(acat, w3_ref[w_idx],
                        preferred_element_type=jnp.float32) + b_ref[b_idx]
            if res is not None:
                y = y + res
            return jnp.maximum(y, 0.0)

        # ---- left BasicBlock: Cin -> Cout ---------------------------------
        h1 = conv3x3(a, 0, 0)                             # relu(bn1(conv1(x)))
        if has_proj:                                      # bn_sc(conv1x1(x))
            sc = (jnp.dot(a.astype(jnp.bfloat16), w1_ref[0],
                          preferred_element_type=jnp.float32) + b_ref[2])
            i_r1, i_r2, i_b1r, i_b2r, i_br = 1, 2, 3, 4, 5
        else:                                             # identity shortcut:
            sc = a                                        # no matmul at all
            i_r1, i_r2, i_b1r, i_b2r, i_br = 0, 1, 2, 3, 4
        out1 = conv3x3(h1, 1, 1, res=sc)                  # relu(bn2(conv2)+sc)

        # ---- right BasicBlock: Cout -> Cout (identity shortcut) ------------
        h2 = conv3x3(out1, 2, i_b1r)
        out2 = conv3x3(h2, 3, i_b2r, res=out1)

        # ---- Root: relu(bn(conv1x1(cat([out1, out2], C)))) ------------------
        # Channel concat absorbed into two banded matmuls.
        y = (jnp.dot(out1.astype(jnp.bfloat16), w1_ref[i_r1],
                     preferred_element_type=jnp.float32)
             + jnp.dot(out2.astype(jnp.bfloat16), w1_ref[i_r2],
                       preferred_element_type=jnp.float32)
             + b_ref[i_br])
        o_ref[...] = jnp.maximum(y, 0.0).astype(o_ref.dtype)

    return kernel


# ---------------------------------------------------------------------------
# pallas_call wrappers
# ---------------------------------------------------------------------------

def _tree_packed(x_packed, w3, w1, b, *, has_proj, nb):
    """Fused Tree on lane-packed (N, H, W*Cout) f32 activations."""
    N, H, WC = x_packed.shape
    n_pad = -(-N // nb) * nb
    x = x_packed if n_pad == N else jnp.pad(
        x_packed, ((0, n_pad - N), (0, 0), (0, 0)))
    x2d = x.reshape(n_pad * H, WC)            # free: merges leading dims only
    M = nb * H                                # MXU rows per grid step

    out2d = pl.pallas_call(
        _make_tree_kernel(H, has_proj),
        out_shape=jax.ShapeDtypeStruct((n_pad * H, WC), jnp.float32),
        grid=(n_pad // nb,),
        in_specs=[pl.BlockSpec((M, WC), lambda n: (n, 0)),
                  pl.BlockSpec(w3.shape, lambda n: (0, 0, 0)),
                  pl.BlockSpec(w1.shape, lambda n: (0, 0, 0)),
                  pl.BlockSpec(b.shape, lambda n: (0, 0, 0))],
        out_specs=pl.BlockSpec((M, WC), lambda n: (n, 0)),
        compiler_params=pltpu.CompilerParams(
            dimension_semantics=("parallel",)),   # megacore / v7x 2-TC split
    )(x2d, w3, w1, b)
    return out2d.reshape(n_pad, H, WC)[:N]


# Packed-layout entry point: chain Tree calls without NCHW round trips.
tree_forward_packed = jax.jit(_tree_packed, static_argnames=("has_proj", "nb"))


@partial(jax.jit, static_argnames=("has_proj", "nb"))
def _tree_forward_nchw(x_nchw, w3, w1, b, *, has_proj, nb):
    N, Cin, H, W = x_nchw.shape
    Cout = w3.shape[-1] // W
    # NCHW -> lane-packed (N, H, W*Cout); padded channels are zero so the
    # zero-padded weight rows contribute nothing.
    x = jnp.transpose(x_nchw, (0, 2, 3, 1)).astype(jnp.float32)
    if Cin < Cout:
        x = jnp.pad(x, ((0, 0), (0, 0), (0, 0), (0, Cout - Cin)))
    x = x.reshape(N, H, W * Cout)
    out = _tree_packed(x, w3, w1, b, has_proj=has_proj, nb=nb)
    out = out.reshape(N, H, W, Cout)
    return jnp.transpose(out, (0, 3, 1, 2)).astype(x_nchw.dtype)


def tree_forward(x_nchw, prep, nb=None):
    """Tree(BasicBlock, Cin, Cout, level=1, stride=1) forward. NCHW in/out.

    `prep` comes from prepare_tree_weights() (one-time banded-weight build).
    `nb` = samples per grid step; default targets ~256 MXU rows per matmul.
    """
    N, _, H, _ = x_nchw.shape
    if nb is None:
        nb = max(1, min(N, max(1, 256 // H)))
    return _tree_forward_nchw(x_nchw, prep["W3"], prep["W1"], prep["B"],
                              has_proj=prep["has_proj"], nb=nb)


# ---------------------------------------------------------------------------
# One-time weight preparation (banded MXU matrices, BN folded, bf16)
# ---------------------------------------------------------------------------

def _band_1x1(w2d, scale, W):
    """(Ci, Co) 1x1 weight (BN scale folded) -> (W*Ci, W*Co) block-diagonal."""
    wf = w2d.astype(jnp.float32) * scale.astype(jnp.float32)
    return jnp.kron(jnp.eye(W, dtype=jnp.float32), wf)


def _band_3x3(w_hwio, scale, W):
    """(3,3,Ci,Co) HWIO weight (BN scale folded) -> (3*W*Ci, W*Co) banded.

    Row blocks ordered kh = 0,1,2 (dy = -1,0,+1); within each block the kw
    taps and SAME zero padding along W are encoded as a banded block matrix,
    so the kernel needs exactly one matmul per 3x3 conv.
    """
    _, _, ci, co = w_hwio.shape
    wf = w_hwio.astype(jnp.float32) * scale.astype(jnp.float32)
    bands = []
    for kh in range(3):
        blk = jnp.zeros((W * ci, W * co), jnp.float32)
        for kw in range(3):
            dx = kw - 1
            sel = jnp.eye(W, k=-dx, dtype=jnp.float32)   # x_in = x_out + dx
            blk = blk + jnp.kron(sel, wf[kh, kw])
        bands.append(blk)
    return jnp.concatenate(bands, axis=0)


def _bias_row(bias, W):
    return jnp.tile(bias.astype(jnp.float32), W).reshape(1, W * bias.shape[0])


def _pad_cin(w_hwio, cin_p):
    pad = cin_p - w_hwio.shape[2]
    if pad == 0:
        return w_hwio
    return jnp.pad(w_hwio, ((0, 0), (0, 0), (0, pad), (0, 0)))


def prepare_tree_weights(params, W):
    """Call once at parameter-load time: fold BN, build banded bf16 MXU
    weights, pack everything into 3 stacked arrays."""
    lt, rt, rp = params["left"], params["right"], params["root"]
    Cout = rp["w"].shape[-1]
    Cin = lt["w1"].shape[2]
    if Cin > Cout:
        # TODO(synk): Cin > Cout needs a second lane width; unused by this net.
        raise NotImplementedError("Tree kernel assumes in_channels <= out_channels")

    w3 = jnp.stack([
        _band_3x3(_pad_cin(lt["w1"], Cout), lt["s1"], W),
        _band_3x3(lt["w2"], lt["s2"], W),
        _band_3x3(rt["w1"], rt["s1"], W),
        _band_3x3(rt["w2"], rt["s2"], W),
    ]).astype(jnp.bfloat16)

    wroot = rp["w"].reshape(2 * Cout, Cout)
    wr1 = _band_1x1(wroot[:Cout], rp["scale"], W)
    wr2 = _band_1x1(wroot[Cout:], rp["scale"], W)

    has_proj = "w_sc" in lt
    if has_proj:   # projection shortcut (Cin != Cout)
        wsc = jnp.pad(lt["w_sc"].reshape(Cin, Cout), ((0, Cout - Cin), (0, 0)))
        w1 = jnp.stack([_band_1x1(wsc, lt["s_sc"], W), wr1, wr2])
        b = jnp.stack([_bias_row(lt["b1"], W), _bias_row(lt["b2"], W),
                       _bias_row(lt["b_sc"], W), _bias_row(rt["b1"], W),
                       _bias_row(rt["b2"], W), _bias_row(rp["bias"], W)])
    else:          # identity shortcut -> no shortcut matmul at all
        w1 = jnp.stack([wr1, wr2])
        b = jnp.stack([_bias_row(lt["b1"], W), _bias_row(lt["b2"], W),
                       _bias_row(rt["b1"], W), _bias_row(rt["b2"], W),
                       _bias_row(rp["bias"], W)])

    return {"W3": w3, "W1": w1.astype(jnp.bfloat16), "B": b,
            "has_proj": has_proj, "cin": Cin, "cout": Cout}


# ---------------------------------------------------------------------------
# Pure-JAX reference (correctness check)
# ---------------------------------------------------------------------------

def _ref_conv_bn(x, w, scale, bias):
    y = lax.conv_general_dilated(x, w, (1, 1), "SAME",
                                 dimension_numbers=("NHWC", "HWIO", "NHWC"))
    return y * scale + bias


def _ref_basic_block(x, p):
    h1 = jax.nn.relu(_ref_conv_bn(x, p["w1"], p["s1"], p["b1"]))
    h2 = _ref_conv_bn(h1, p["w2"], p["s2"], p["b2"])
    sc = _ref_conv_bn(x, p["w_sc"], p["s_sc"], p["b_sc"]) if "w_sc" in p else x
    return jax.nn.relu(h2 + sc)


def tree_forward_ref(x_nchw, params):
    x = jnp.transpose(x_nchw, (0, 2, 3, 1))
    out1 = _ref_basic_block(x, params["left"])
    out2 = _ref_basic_block(out1, params["right"])
    cat = jnp.concatenate([out1, out2], axis=-1)
    out = jax.nn.relu(_ref_conv_bn(cat, params["root"]["w"],
                                   params["root"]["scale"],
                                   params["root"]["bias"]))
    return jnp.transpose(out, (0, 3, 1, 2))


# ---------------------------------------------------------------------------
# Deterministic parameter init (synthetic; BN folded to scale/bias)
# ---------------------------------------------------------------------------

def _make_bn(key, c, eps=1e-5):
    k0, k1, k2, k3 = jax.random.split(key, 4)
    gamma = 1.0 + 0.1 * jax.random.normal(k0, (c,), jnp.float32)
    beta = 0.1 * jax.random.normal(k1, (c,), jnp.float32)
    mean = 0.1 * jax.random.normal(k2, (c,), jnp.float32)
    var = 0.5 + 0.1 * jnp.abs(jax.random.normal(k3, (c,), jnp.float32))
    scale = gamma / jnp.sqrt(var + eps)
    bias = beta - mean * scale
    return scale, bias


def _init_basic_block(key, cin, cout):
    ks = jax.random.split(key, 6)
    p = {}
    p["w1"] = 0.1 * jax.random.normal(ks[0], (3, 3, cin, cout), jnp.float32)
    p["s1"], p["b1"] = _make_bn(ks[1], cout)
    p["w2"] = 0.1 * jax.random.normal(ks[2], (3, 3, cout, cout), jnp.float32)
    p["s2"], p["b2"] = _make_bn(ks[3], cout)
    if cin != cout:  # stride == 1 (default); shortcut only needed on C change
        p["w_sc"] = 0.1 * jax.random.normal(ks[4], (1, 1, cin, cout),
                                            jnp.float32)
        p["s_sc"], p["b_sc"] = _make_bn(ks[5], cout)
    return p


def init_tree_params(key, cin, cout):
    k_left, k_right, k_root_w, k_root_bn = jax.random.split(key, 4)
    root_scale, root_bias = _make_bn(k_root_bn, cout)
    return {
        "left": _init_basic_block(k_left, cin, cout),
        "right": _init_basic_block(k_right, cout, cout),
        "root": {
            "w": 0.1 * jax.random.normal(k_root_w, (1, 1, 2 * cout, cout),
                                         jnp.float32),
            "scale": root_scale,
            "bias": root_bias,
        },
    }


# ---------------------------------------------------------------------------
if __name__ == "__main__":
    key = jax.random.PRNGKey(0)
    k_params, k_x = jax.random.split(key)

    N, Cin, Cout, H, W = 2, 4, 8, 16, 16
    params = init_tree_params(k_params, Cin, Cout)
    x = jax.random.normal(k_x, (N, Cin, H, W), jnp.float32)   # NCHW like PyTorch

    prep = prepare_tree_weights(params, W)       # one-time banded-weight build
    out = jax.block_until_ready(tree_forward(x, prep))
    ref = jax.block_until_ready(tree_forward_ref(x, params))

    assert out.shape == (N, Cout, H, W), out.shape
    # bf16 MXU operands (f32 accumulation / epilogue) -> looser tolerance.
    np.testing.assert_allclose(np.asarray(out), np.asarray(ref),
                               rtol=5e-2, atol=5e-2)
    print("KERNEL_OK")
</pallas_src>

<mosaic_0001>
module attributes {stable_mosaic.version = 11 : i64} {
  func.func @kernel(%arg0: i32, %arg1: memref<32x128xf32, #tpu.memory_space<vmem>>, %arg2: memref<4x384x128xbf16, #tpu.memory_space<vmem>>, %arg3: memref<3x128x128xbf16, #tpu.memory_space<vmem>>, %arg4: memref<6x1x128xf32, #tpu.memory_space<vmem>>, %arg5: memref<32x128xf32, #tpu.memory_space<vmem>>) attributes {dimension_semantics = [#tpu.dimension_semantics<parallel>], iteration_bounds = array<i64: 1>, scalar_prefetch = 0 : i64, scratch_operands = 0 : i64, tpu.core_type = #tpu.core_type<tc>, window_params = [{transform_indices = @transform_0, window_bounds = array<i64: 32, 128>}, {pipeline_mode = #tpu.pipeline_mode<synchronous>, transform_indices = @transform_1, window_bounds = array<i64: 4, 384, 128>}, {pipeline_mode = #tpu.pipeline_mode<synchronous>, transform_indices = @transform_2, window_bounds = array<i64: 3, 128, 128>}, {pipeline_mode = #tpu.pipeline_mode<synchronous>, transform_indices = @transform_3, window_bounds = array<i64: 6, 1, 128>}, {transform_indices = @transform_4, window_bounds = array<i64: 32, 128>}]} {
    %c0 = arith.constant 0 : index
    %c0_0 = arith.constant 0 : index
    %0 = vector.load %arg1[%c0, %c0_0] : memref<32x128xf32, #tpu.memory_space<vmem>>, vector<32x128xf32>
    %1 = tpu.iota {dimensions = array<i32: 0>} : vector<32x128xi32>
    %c16_i32 = arith.constant 16 : i32
    %c0_i32 = arith.constant 0 : i32
    %2 = arith.cmpi eq, %c16_i32, %c0_i32 : i32
    %c1_i32 = arith.constant 1 : i32
    %3 = arith.select %2, %c1_i32, %c16_i32 : i32
    %4 = vector.broadcast %3 : i32 to vector<32x128xi32>
    %5 = arith.remsi %1, %4 : vector<32x128xi32>
    %c0_i32_1 = arith.constant 0 : i32
    %6 = vector.broadcast %c0_i32_1 : i32 to vector<32x128xi32>
    %7 = arith.cmpi ne, %5, %6 : vector<32x128xi32>
    %c0_i32_2 = arith.constant 0 : i32
    %8 = vector.broadcast %c0_i32_2 : i32 to vector<32x128xi32>
    %9 = arith.cmpi slt, %5, %8 : vector<32x128xi32>
    %c0_i32_3 = arith.constant 0 : i32
    %10 = arith.cmpi slt, %3, %c0_i32_3 : i32
    %11 = vector.broadcast %10 : i1 to vector<32x128xi1>
    %12 = vector.broadcast %11 : vector<32x128xi1> to vector<32x128xi1>
    %13 = arith.xori %9, %12 : vector<32x128xi1>
    %14 = arith.andi %13, %7 : vector<32x128xi1>
    %15 = vector.broadcast %3 : i32 to vector<32x128xi32>
    %16 = arith.addi %5, %15 : vector<32x128xi32>
    %17 = arith.select %14, %16, %5 : vector<32x128xi1>, vector<32x128xi32>
    %c0_i32_4 = arith.constant 0 : i32
    %18 = vector.broadcast %c0_i32_4 : i32 to vector<32x128xi32>
    %19 = arith.cmpi sgt, %17, %18 : vector<32x128xi32>
    %c15_i32 = arith.constant 15 : i32
    %20 = vector.broadcast %c15_i32 : i32 to vector<32x128xi32>
    %21 = arith.cmpi slt, %17, %20 : vector<32x128xi32>
    %c1_i32_5 = arith.constant 1 : i32
    %22 = tpu.dynamic_rotate %0 by %c1_i32_5 dim 0 : vector<32x128xf32>, i32 -> vector<32x128xf32>
    %cst = arith.constant 0.000000e+00 : f32
    %23 = vector.broadcast %cst : f32 to vector<32x128xf32>
    %24 = arith.select %19, %22, %23 : vector<32x128xi1>, vector<32x128xf32>
    %c31_i32 = arith.constant 31 : i32
    %25 = tpu.dynamic_rotate %0 by %c31_i32 dim 0 : vector<32x128xf32>, i32 -> vector<32x128xf32>
    %cst_6 = arith.constant 0.000000e+00 : f32
    %26 = vector.broadcast %cst_6 : f32 to vector<32x128xf32>
    %27 = arith.select %21, %25, %26 : vector<32x128xi1>, vector<32x128xf32>
    %28 = tpu.concatenate %24, %0, %27 in 1 : vector<32x128xf32>, vector<32x128xf32>, vector<32x128xf32> -> vector<32x384xf32>
    %29 = arith.truncf %28 : vector<32x384xf32> to vector<32x384xbf16>
    %c0_7 = arith.constant 0 : index
    %c0_8 = arith.constant 0 : index
    %c0_9 = arith.constant 0 : index
    %30 = vector.load %arg2[%c0_7, %c0_8, %c0_9] : memref<4x384x128xbf16, #tpu.memory_space<vmem>>, vector<1x384x128xbf16>
    %31 = vector.shape_cast %30 : vector<1x384x128xbf16> to vector<384x128xbf16>
    %cst_10 = arith.constant dense<0.000000e+00> : vector<32x128xf32>
    %32 = tpu.matmul %29, %31, %cst_10 {dimension_numbers = #tpu.dot_dimension_numbers<[1], [0], [0], [1], [0, 0, 1, 1], [], []>} : vector<32x384xbf16>, vector<384x128xbf16>, vector<32x128xf32> -> vector<32x128xf32>
    %c0_11 = arith.constant 0 : index
    %c0_12 = arith.constant 0 : index
    %c0_13 = arith.constant 0 : index
    %33 = vector.load %arg4[%c0_11, %c0_12, %c0_13] : memref<6x1x128xf32, #tpu.memory_space<vmem>>, vector<1x1x128xf32>
    %34 = vector.shape_cast %33 : vector<1x1x128xf32> to vector<1x128xf32>
    %35 = vector.broadcast %34 : vector<1x128xf32> to vector<32x128xf32>
    %36 = arith.addf %32, %35 : vector<32x128xf32>
    %cst_14 = arith.constant 0.000000e+00 : f32
    %37 = vector.broadcast %cst_14 : f32 to vector<32x128xf32>
    %38 = arith.maximumf %36, %37 : vector<32x128xf32>
    %39 = arith.truncf %0 : vector<32x128xf32> to vector<32x128xbf16>
    %c0_15 = arith.constant 0 : index
    %c0_16 = arith.constant 0 : index
    %c0_17 = arith.constant 0 : index
    %40 = vector.load %arg3[%c0_15, %c0_16, %c0_17] : memref<3x128x128xbf16, #tpu.memory_space<vmem>>, vector<1x128x128xbf16>
    %41 = vector.shape_cast %40 : vector<1x128x128xbf16> to vector<128x128xbf16>
    %cst_18 = arith.constant dense<0.000000e+00> : vector<32x128xf32>
    %42 = tpu.matmul %39, %41, %cst_18 {dimension_numbers = #tpu.dot_dimension_numbers<[1], [0], [0], [1], [0, 0, 1, 1], [], []>} : vector<32x128xbf16>, vector<128x128xbf16>, vector<32x128xf32> -> vector<32x128xf32>
    %c2 = arith.constant 2 : index
    %c0_19 = arith.constant 0 : index
    %c0_20 = arith.constant 0 : index
    %43 = vector.load %arg4[%c2, %c0_19, %c0_20] : memref<6x1x128xf32, #tpu.memory_space<vmem>>, vector<1x1x128xf32>
    %44 = vector.shape_cast %43 : vector<1x1x128xf32> to vector<1x128xf32>
    %45 = vector.broadcast %44 : vector<1x128xf32> to vector<32x128xf32>
    %46 = arith.addf %42, %45 : vector<32x128xf32>
    %c1_i32_21 = arith.constant 1 : i32
    %47 = tpu.dynamic_rotate %38 by %c1_i32_21 dim 0 : vector<32x128xf32>, i32 -> vector<32x128xf32>
    %cst_22 = arith.constant 0.000000e+00 : f32
    %48 = vector.broadcast %cst_22 : f32 to vector<32x128xf32>
    %49 = arith.select %19, %47, %48 : vector<32x128xi1>, vector<32x128xf32>
    %c31_i32_23 = arith.constant 31 : i32
    %50 = tpu.dynamic_rotate %38 by %c31_i32_23 dim 0 : vector<32x128xf32>, i32 -> vector<32x128xf32>
    %cst_24 = arith.constant 0.000000e+00 : f32
    %51 = vector.broadcast %cst_24 : f32 to vector<32x128xf32>
    %52 = arith.select %21, %50, %51 : vector<32x128xi1>, vector<32x128xf32>
    %53 = tpu.concatenate %49, %38, %52 in 1 : vector<32x128xf32>, vector<32x128xf32>, vector<32x128xf32> -> vector<32x384xf32>
    %54 = arith.truncf %53 : vector<32x384xf32> to vector<32x384xbf16>
    %c1 = arith.constant 1 : index
    %c0_25 = arith.constant 0 : index
    %c0_26 = arith.constant 0 : index
    %55 = vector.load %arg2[%c1, %c0_25, %c0_26] : memref<4x384x128xbf16, #tpu.memory_space<vmem>>, vector<1x384x128xbf16>
    %56 = vector.shape_cast %55 : vector<1x384x128xbf16> to vector<384x128xbf16>
    %cst_27 = arith.constant dense<0.000000e+00> : vector<32x128xf32>
    %57 = tpu.matmul %54, %56, %cst_27 {dimension_numbers = #tpu.dot_dimension_numbers<[1], [0], [0], [1], [0, 0, 1, 1], [], []>} : vector<32x384xbf16>, vector<384x128xbf16>, vector<32x128xf32> -> vector<32x128xf32>
    %c1_28 = arith.constant 1 : index
    %c0_29 = arith.constant 0 : index
    %c0_30 = arith.constant 0 : index
    %58 = vector.load %arg4[%c1_28, %c0_29, %c0_30] : memref<6x1x128xf32, #tpu.memory_space<vmem>>, vector<1x1x128xf32>
    %59 = vector.shape_cast %58 : vector<1x1x128xf32> to vector<1x128xf32>
    %60 = vector.broadcast %59 : vector<1x128xf32> to vector<32x128xf32>
    %61 = arith.addf %57, %60 : vector<32x128xf32>
    %62 = arith.addf %61, %46 : vector<32x128xf32>
    %cst_31 = arith.constant 0.000000e+00 : f32
    %63 = vector.broadcast %cst_31 : f32 to vector<32x128xf32>
    %64 = arith.maximumf %62, %63 : vector<32x128xf32>
    %c1_i32_32 = arith.constant 1 : i32
    %65 = tpu.dynamic_rotate %64 by %c1_i32_32 dim 0 : vector<32x128xf32>, i32 -> vector<32x128xf32>
    %cst_33 = arith.constant 0.000000e+00 : f32
    %66 = vector.broadcast %cst_33 : f32 to vector<32x128xf32>
    %67 = arith.select %19, %65, %66 : vector<32x128xi1>, vector<32x128xf32>
    %c31_i32_34 = arith.constant 31 : i32
    %68 = tpu.dynamic_rotate %64 by %c31_i32_34 dim 0 : vector<32x128xf32>, i32 -> vector<32x128xf32>
    %cst_35 = arith.constant 0.000000e+00 : f32
    %69 = vector.broadcast %cst_35 : f32 to vector<32x128xf32>
    %70 = arith.select %21, %68, %69 : vector<32x128xi1>, vector<32x128xf32>
    %71 = tpu.concatenate %67, %64, %70 in 1 : vector<32x128xf32>, vector<32x128xf32>, vector<32x128xf32> -> vector<32x384xf32>
    %72 = arith.truncf %71 : vector<32x384xf32> to vector<32x384xbf16>
    %c2_36 = arith.constant 2 : index
    %c0_37 = arith.constant 0 : index
    %c0_38 = arith.constant 0 : index
    %73 = vector.load %arg2[%c2_36, %c0_37, %c0_38] : memref<4x384x128xbf16, #tpu.memory_space<vmem>>, vector<1x384x128xbf16>
    %74 = vector.shape_cast %73 : vector<1x384x128xbf16> to vector<384x128xbf16>
    %cst_39 = arith.constant dense<0.000000e+00> : vector<32x128xf32>
    %75 = tpu.matmul %72, %74, %cst_39 {dimension_numbers = #tpu.dot_dimension_numbers<[1], [0], [0], [1], [0, 0, 1, 1], [], []>} : vector<32x384xbf16>, vector<384x128xbf16>, vector<32x128xf32> -> vector<32x128xf32>
    %c3 = arith.constant 3 : index
    %c0_40 = arith.constant 0 : index
    %c0_41 = arith.constant 0 : index
    %76 = vector.load %arg4[%c3, %c0_40, %c0_41] : memref<6x1x128xf32, #tpu.memory_space<vmem>>, vector<1x1x128xf32>
    %77 = vector.shape_cast %76 : vector<1x1x128xf32> to vector<1x128xf32>
    %78 = vector.broadcast %77 : vector<1x128xf32> to vector<32x128xf32>
    %79 = arith.addf %75, %78 : vector<32x128xf32>
    %cst_42 = arith.constant 0.000000e+00 : f32
    %80 = vector.broadcast %cst_42 : f32 to vector<32x128xf32>
    %81 = arith.maximumf %79, %80 : vector<32x128xf32>
    %c1_i32_43 = arith.constant 1 : i32
    %82 = tpu.dynamic_rotate %81 by %c1_i32_43 dim 0 : vector<32x128xf32>, i32 -> vector<32x128xf32>
    %cst_44 = arith.constant 0.000000e+00 : f32
    %83 = vector.broadcast %cst_44 : f32 to vector<32x128xf32>
    %84 = arith.select %19, %82, %83 : vector<32x128xi1>, vector<32x128xf32>
    %c31_i32_45 = arith.constant 31 : i32
    %85 = tpu.dynamic_rotate %81 by %c31_i32_45 dim 0 : vector<32x128xf32>, i32 -> vector<32x128xf32>
    %cst_46 = arith.constant 0.000000e+00 : f32
    %86 = vector.broadcast %cst_46 : f32 to vector<32x128xf32>
    %87 = arith.select %21, %85, %86 : vector<32x128xi1>, vector<32x128xf32>
    %88 = tpu.concatenate %84, %81, %87 in 1 : vector<32x128xf32>, vector<32x128xf32>, vector<32x128xf32> -> vector<32x384xf32>
    %89 = arith.truncf %88 : vector<32x384xf32> to vector<32x384xbf16>
    %c3_47 = arith.constant 3 : index
    %c0_48 = arith.constant 0 : index
    %c0_49 = arith.constant 0 : index
    %90 = vector.load %arg2[%c3_47, %c0_48, %c0_49] : memref<4x384x128xbf16, #tpu.memory_space<vmem>>, vector<1x384x128xbf16>
    %91 = vector.shape_cast %90 : vector<1x384x128xbf16> to vector<384x128xbf16>
    %cst_50 = arith.constant dense<0.000000e+00> : vector<32x128xf32>
    %92 = tpu.matmul %89, %91, %cst_50 {dimension_numbers = #tpu.dot_dimension_numbers<[1], [0], [0], [1], [0, 0, 1, 1], [], []>} : vector<32x384xbf16>, vector<384x128xbf16>, vector<32x128xf32> -> vector<32x128xf32>
    %c4 = arith.constant 4 : index
    %c0_51 = arith.constant 0 : index
    %c0_52 = arith.constant 0 : index
    %93 = vector.load %arg4[%c4, %c0_51, %c0_52] : memref<6x1x128xf32, #tpu.memory_space<vmem>>, vector<1x1x128xf32>
    %94 = vector.shape_cast %93 : vector<1x1x128xf32> to vector<1x128xf32>
    %95 = vector.broadcast %94 : vector<1x128xf32> to vector<32x128xf32>
    %96 = arith.addf %92, %95 : vector<32x128xf32>
    %97 = arith.addf %96, %64 : vector<32x128xf32>
    %cst_53 = arith.constant 0.000000e+00 : f32
    %98 = vector.broadcast %cst_53 : f32 to vector<32x128xf32>
    %99 = arith.maximumf %97, %98 : vector<32x128xf32>
    %100 = arith.truncf %64 : vector<32x128xf32> to vector<32x128xbf16>
    %c1_54 = arith.constant 1 : index
    %c0_55 = arith.constant 0 : index
    %c0_56 = arith.constant 0 : index
    %101 = vector.load %arg3[%c1_54, %c0_55, %c0_56] : memref<3x128x128xbf16, #tpu.memory_space<vmem>>, vector<1x128x128xbf16>
    %102 = vector.shape_cast %101 : vector<1x128x128xbf16> to vector<128x128xbf16>
    %cst_57 = arith.constant dense<0.000000e+00> : vector<32x128xf32>
    %103 = tpu.matmul %100, %102, %cst_57 {dimension_numbers = #tpu.dot_dimension_numbers<[1], [0], [0], [1], [0, 0, 1, 1], [], []>} : vector<32x128xbf16>, vector<128x128xbf16>, vector<32x128xf32> -> vector<32x128xf32>
    %104 = arith.truncf %99 : vector<32x128xf32> to vector<32x128xbf16>
    %c2_58 = arith.constant 2 : index
    %c0_59 = arith.constant 0 : index
    %c0_60 = arith.constant 0 : index
    %105 = vector.load %arg3[%c2_58, %c0_59, %c0_60] : memref<3x128x128xbf16, #tpu.memory_space<vmem>>, vector<1x128x128xbf16>
    %106 = vector.shape_cast %105 : vector<1x128x128xbf16> to vector<128x128xbf16>
    %cst_61 = arith.constant dense<0.000000e+00> : vector<32x128xf32>
    %107 = tpu.matmul %104, %106, %cst_61 {dimension_numbers = #tpu.dot_dimension_numbers<[1], [0], [0], [1], [0, 0, 1, 1], [], []>} : vector<32x128xbf16>, vector<128x128xbf16>, vector<32x128xf32> -> vector<32x128xf32>
    %108 = arith.addf %103, %107 : vector<32x128xf32>
    %c5 = arith.constant 5 : index
    %c0_62 = arith.constant 0 : index
    %c0_63 = arith.constant 0 : index
    %109 = vector.load %arg4[%c5, %c0_62, %c0_63] : memref<6x1x128xf32, #tpu.memory_space<vmem>>, vector<1x1x128xf32>
    %110 = vector.shape_cast %109 : vector<1x1x128xf32> to vector<1x128xf32>
    %111 = vector.broadcast %110 : vector<1x128xf32> to vector<32x128xf32>
    %112 = arith.addf %108, %111 : vector<32x128xf32>
    %cst_64 = arith.constant 0.000000e+00 : f32
    %113 = vector.broadcast %cst_64 : f32 to vector<32x128xf32>
    %114 = arith.maximumf %112, %113 : vector<32x128xf32>
    %c0_65 = arith.constant 0 : index
    %c0_66 = arith.constant 0 : index
    %115 = vector.load %arg5[%c0_65, %c0_66] : memref<32x128xf32, #tpu.memory_space<vmem>>, vector<32x128xf32>
    tpu.vector_store %arg5[%c0_65, %c0_66], %114 {strides = array<i32>} : memref<32x128xf32, #tpu.memory_space<vmem>>, vector<32x128xf32>,
    return
  }
  func.func @transform_0(%arg0: i32) -> (i32, i32) {
    %c0_i32 = arith.constant 0 : i32
    %c0_i32_0 = arith.constant 0 : i32
    return %arg0, %c0_i32 : i32, i32
  }
  func.func @transform_1(%arg0: i32) -> (i32, i32, i32) {
    %c0_i32 = arith.constant 0 : i32
    %c0_i32_0 = arith.constant 0 : i32
    %c0_i32_1 = arith.constant 0 : i32
    %c0_i32_2 = arith.constant 0 : i32
    return %c0_i32, %c0_i32_0, %c0_i32_1 : i32, i32, i32
  }
  func.func @transform_2(%arg0: i32) -> (i32, i32, i32) {
    %c0_i32 = arith.constant 0 : i32
    %c0_i32_0 = arith.constant 0 : i32
    %c0_i32_1 = arith.constant 0 : i32
    %c0_i32_2 = arith.constant 0 : i32
    return %c0_i32, %c0_i32_0, %c0_i32_1 : i32, i32, i32
  }
  func.func @transform_3(%arg0: i32) -> (i32, i32, i32) {
    %c0_i32 = arith.constant 0 : i32
    %c0_i32_0 = arith.constant 0 : i32
    %c0_i32_1 = arith.constant 0 : i32
    %c0_i32_2 = arith.constant 0 : i32
    return %c0_i32, %c0_i32_0, %c0_i32_1 : i32, i32, i32
  }
  func.func @transform_4(%arg0: i32) -> (i32, i32) {
    %c0_i32 = arith.constant 0 : i32
    %c0_i32_0 = arith.constant 0 : i32
    return %arg0, %c0_i32 : i32, i32
  }
}

</mosaic_0001>

<llo_original>
// kernel: _tree_forward_nchw.1
$region0: #{_tree_forward_nchw.1}
  #allocation0 [shape = 'u32[]', space=smem, size = 0x4, offset = 0x4, fixed_abs, tag = 'smem constant byte address 0x4 - core index']
  #allocation1 [shape = 'u32[72,128]{1,0:T(1,128)}', space=vmem, size = 0x9000, scoped, tag = 'internal scratch']
  %s0 = inlined_call_operand.vmem [shape: f32[32,128], index: 0, kind: input, shape index: {}]
  %s1 = inlined_call_operand.vmem [shape: bf16[4,384,128], index: 1, kind: input, shape index: {}]
  %s2 = inlined_call_operand.vmem [shape: bf16[3,128,128], index: 2, kind: input, shape index: {}]
  %s3 = inlined_call_operand.vmem [shape: f32[6,1,128], index: 3, kind: input, shape index: {}]
  %s4 = inlined_call_operand.vmem [shape: f32[32,128], index: 4, kind: output, shape index: {}]
  %s5 = sld [smem:[#allocation0]]
  $region26: #{_tree_forward_nchw.1} parent=0
    _
  %s7 = ssub.s32 1, %s5
  %s8 = scalar_select 0, %s7, %s5
  // Predicated region
  $region2: #{_tree_forward_nchw.1} parent=0 // pred_check
    _
  $region3: #{_tree_forward_nchw.1} parent=0 // pred_check_branch
    %10 = sbr.rel (0) target = $region5
  $region4: #{_tree_forward_nchw.1} parent=0 // pred_region
    _
  $region5: #{_tree_forward_nchw.1} parent=0 // pred_fallthru
    _
  // Predicated region
  $region6: #{_tree_forward_nchw.1} parent=0 // pred_check
    _
  $region7: #{_tree_forward_nchw.1} parent=0 // pred_check_branch
    %12 = sbr.rel (0) target = $region9
  $region8: #{_tree_forward_nchw.1} parent=0 // pred_region
    _
  $region9: #{_tree_forward_nchw.1} parent=0 // pred_fallthru
    _
  // Predicated region
  $region10: #{_tree_forward_nchw.1} parent=0 // pred_check
    _
  $region11: #{_tree_forward_nchw.1} parent=0 // pred_check_branch
    %14 = sbr.rel (0) target = $region13
  $region12: #{_tree_forward_nchw.1} parent=0 // pred_region
    _
  $region13: #{_tree_forward_nchw.1} parent=0 // pred_fallthru
    _
  // Predicated region
  $region14: #{_tree_forward_nchw.1} parent=0 // pred_check
    _
  $region15: #{_tree_forward_nchw.1} parent=0 // pred_check_branch
    %16 = sbr.rel (0) target = $region17
  $region16: #{_tree_forward_nchw.1} parent=0 // pred_region
    _
  $region17: #{_tree_forward_nchw.1} parent=0 // pred_fallthru
    _
  %v17 = vld [vmem:[%s0] sm:$0xff]
  %v18 = vld [vmem:[%s0 + $0x8] sm:$0xff]
  %v19 = vld [vmem:[%s0 + $0x10] sm:$0xff]
  %v20 = vld [vmem:[%s0 + $0x18] sm:$0xff]
  %v21 = vlaneseq
  %v22 = vshrl.u32 %v21, 7
  %v23 = vadd.s32 %v22, 8
  %v24 = vadd.s32 %v22, 16
  %v25 = vadd.s32 %v22, 24
  %vm26 = vcmp.lt.s32.totalorder %v22, 0
  %v27 = vsub.s32 0, %v22
  %v28 = vsel %vm26, %v27, %v22
  %v29 = vshrl.u32 %v28, 4
  %v30 = vand.u32 %v28, 15
  %v31 = vsub.s32 0, %v30
  %v32 = vsel %vm26, %v31, %v30
  %vm33 = vcmp.lt.s32.totalorder %v23, 0
  %v34 = vsub.s32 0, %v23
  %v35 = vsel %vm33, %v34, %v23
  %v36 = vshrl.u32 %v35, 4
  %v37 = vand.u32 %v35, 15
  %v38 = vsub.s32 0, %v37
  %v39 = vsel %vm33, %v38, %v37
  %vm40 = vcmp.lt.s32.totalorder %v24, 0
  %v41 = vsub.s32 0, %v24
  %v42 = vsel %vm40, %v41, %v24
  %v43 = vshrl.u32 %v42, 4
  %v44 = vand.u32 %v42, 15
  %v45 = vsub.s32 0, %v44
  %v46 = vsel %vm40, %v45, %v44
  %vm47 = vcmp.lt.s32.totalorder %v25, 0
  %v48 = vsub.s32 0, %v25
  %v49 = vsel %vm47, %v48, %v25
  %v50 = vshrl.u32 %v49, 4
  %v51 = vand.u32 %v49, 15
  %v52 = vsub.s32 0, %v51
  %v53 = vsel %vm47, %v52, %v51
  %vm54 = vcmp.ne.s32.totalorder %v32, 0
  %vm55 = vcmp.ne.s32.totalorder %v39, 0
  %vm56 = vcmp.ne.s32.totalorder %v46, 0
  %vm57 = vcmp.ne.s32.totalorder %v53, 0
  %vm58 = vcmp.lt.s32.totalorder %v32, 0
  %vm59 = vcmp.lt.s32.totalorder %v39, 0
  %vm60 = vcmp.lt.s32.totalorder %v46, 0
  %vm61 = vcmp.lt.s32.totalorder %v53, 0
  %vm62 = vmand %vm58, %vm54
  %vm63 = vmand %vm59, %vm55
  %vm64 = vmand %vm60, %vm56
  %vm65 = vmand %vm61, %vm57
  %v66 = vadd.s32 %v32, 16
  %v67 = vadd.s32 %v39, 16
  %v68 = vadd.s32 %v46, 16
  %v69 = vadd.s32 %v53, 16
  %v70 = vsel %vm62, %v66, %v32
  %v71 = vsel %vm63, %v67, %v39
  %v72 = vsel %vm64, %v68, %v46
  %v73 = vsel %vm65, %v69, %v53
  %vm74 = vcmp.gt.s32.totalorder %v70, 0
  %vm75 = vcmp.gt.s32.totalorder %v71, 0
  %vm76 = vcmp.gt.s32.totalorder %v72, 0
  %vm77 = vcmp.gt.s32.totalorder %v73, 0
  %vm78 = vcmp.lt.s32.totalorder %v70, 15
  %vm79 = vcmp.lt.s32.totalorder %v71, 15
  %vm80 = vcmp.lt.s32.totalorder %v72, 15
  %vm81 = vcmp.lt.s32.totalorder %v73, 15
  %v82 = vrot.slane %v17, 7
  %v83 = vrot.slane %v18, 7
  %v84 = vrot.slane %v19, 7
  %v85 = vrot.slane %v20, 7
  %vm86 = vcmp.lt.s32.totalorder %v22, 1
  %v87 = vsel %vm86, %v84, %v85
  %v88 = vsel %vm86, %v83, %v84
  %v89 = vsel %vm86, %v82, %v83
  %v90 = vsel %vm86, %v85, %v82
  %v91 = vsel %vm74, %v90, 0.0
  %v92 = vsel %vm75, %v89, 0.0
  %v93 = vsel %vm76, %v88, 0.0
  %v94 = vsel %vm77, %v87, 0.0
  %v95 = vrot.slane %v17, 1
  %v96 = vrot.slane %v18, 1
  %v97 = vrot.slane %v19, 1
  %v98 = vrot.slane %v20, 1
  %vm99 = vcmp.lt.s32.totalorder %v22, 7
  %v100 = vsel %vm99, %v97, %v98
  %v101 = vsel %vm99, %v96, %v97
  %v102 = vsel %vm99, %v95, %v96
  %v103 = vsel %vm99, %v98, %v95
  %v104 = vsel %vm78, %v102, 0.0
  %v105 = vsel %vm79, %v101, 0.0
  %v106 = vsel %vm80, %v100, 0.0
  %v107 = vsel %vm81, %v103, 0.0
  %v108 = vpack.c.bf16 %v92, %v91
  %v109 = vpack.c.bf16 %v18, %v17
  %v110 = vpack.c.bf16 %v105, %v104
  %v111 = vpack.c.bf16 %v94, %v93
  %v112 = vpack.c.bf16 %v20, %v19
  %v113 = vpack.c.bf16 %v107, %v106
  %v114 = vld [vmem:[%s1] sm:$0xf]
  %v115 = vld [vmem:[%s1 + $0x4] sm:$0xf]
  %v116 = vld [vmem:[%s1 + $0x8] sm:$0xf]
  %v117 = vld [vmem:[%s1 + $0xc] sm:$0xf]
  %v118 = vld [vmem:[%s1 + $0x10] sm:$0xf]
  %v119 = vld [vmem:[%s1 + $0x14] sm:$0xf]
  %v120 = vld [vmem:[%s1 + $0x18] sm:$0xf]
  %v121 = vld [vmem:[%s1 + $0x1c] sm:$0xf]
  %v122 = vld [vmem:[%s1 + $0x20] sm:$0xf]
  %v123 = vld [vmem:[%s1 + $0x24] sm:$0xf]
  %v124 = vld [vmem:[%s1 + $0x28] sm:$0xf]
  %v125 = vld [vmem:[%s1 + $0x2c] sm:$0xf]
  %v126 = vld [vmem:[%s1 + $0x30] sm:$0xf]
  %v127 = vld [vmem:[%s1 + $0x34] sm:$0xf]
  %v128 = vld [vmem:[%s1 + $0x38] sm:$0xf]
  %v129 = vld [vmem:[%s1 + $0x3c] sm:$0xf]
  %v130 = vld [vmem:[%s1 + $0x40] sm:$0xf]
  %v131 = vld [vmem:[%s1 + $0x44] sm:$0xf]
  %v132 = vld [vmem:[%s1 + $0x48] sm:$0xf]
  %v133 = vld [vmem:[%s1 + $0x4c] sm:$0xf]
  %v134 = vld [vmem:[%s1 + $0x50] sm:$0xf]
  %v135 = vld [vmem:[%s1 + $0x54] sm:$0xf]
  %v136 = vld [vmem:[%s1 + $0x58] sm:$0xf]
  %v137 = vld [vmem:[%s1 + $0x5c] sm:$0xf]
  %v138 = vld [vmem:[%s1 + $0x60] sm:$0xf]
  %v139 = vld [vmem:[%s1 + $0x64] sm:$0xf]
  %v140 = vld [vmem:[%s1 + $0x68] sm:$0xf]
  %v141 = vld [vmem:[%s1 + $0x6c] sm:$0xf]
  %v142 = vld [vmem:[%s1 + $0x70] sm:$0xf]
  %v143 = vld [vmem:[%s1 + $0x74] sm:$0xf]
  %v144 = vld [vmem:[%s1 + $0x78] sm:$0xf]
  %v145 = vld [vmem:[%s1 + $0x7c] sm:$0xf]
  %v146 = vld [vmem:[%s1 + $0x80] sm:$0xf]
  %v147 = vld [vmem:[%s1 + $0x84] sm:$0xf]
  %v148 = vld [vmem:[%s1 + $0x88] sm:$0xf]
  %v149 = vld [vmem:[%s1 + $0x8c] sm:$0xf]
  %v150 = vld [vmem:[%s1 + $0x90] sm:$0xf]
  %v151 = vld [vmem:[%s1 + $0x94] sm:$0xf]
  %v152 = vld [vmem:[%s1 + $0x98] sm:$0xf]
  %v153 = vld [vmem:[%s1 + $0x9c] sm:$0xf]
  %v154 = vld [vmem:[%s1 + $0xa0] sm:$0xf]
  %v155 = vld [vmem:[%s1 + $0xa4] sm:$0xf]
  %v156 = vld [vmem:[%s1 + $0xa8] sm:$0xf]
  %v157 = vld [vmem:[%s1 + $0xac] sm:$0xf]
  %v158 = vld [vmem:[%s1 + $0xb0] sm:$0xf]
  %v159 = vld [vmem:[%s1 + $0xb4] sm:$0xf]
  %v160 = vld [vmem:[%s1 + $0xb8] sm:$0xf]
  %v161 = vld [vmem:[%s1 + $0xbc] sm:$0xf]
  %v162 = vld [vmem:[%s3] sm:$0x1]
  %v164 = vperm.slane %v162, 0
  %v214 = vunpack.c.l.b16 %v114
  %v215 = vunpack.c.l.b16 %v115
  %v216 = vunpack.c.l.b16 %v116
  %v217 = vunpack.c.l.b16 %v117
  %v218 = vunpack.c.l.b16 %v118
  %v219 = vunpack.c.l.b16 %v119
  %v220 = vunpack.c.l.b16 %v120
  %v221 = vunpack.c.l.b16 %v121
  %v222 = vunpack.c.l.b16 %v122
  %v223 = vunpack.c.l.b16 %v123
  %v224 = vunpack.c.l.b16 %v124
  %v225 = vunpack.c.l.b16 %v125
  %v226 = vunpack.c.l.b16 %v126
  %v227 = vunpack.c.l.b16 %v127
  %v228 = vunpack.c.l.b16 %v128
  %v229 = vunpack.c.l.b16 %v129
  %v230 = vunpack.c.l.b16 %v130
  %v231 = vunpack.c.l.b16 %v131
  %v232 = vunpack.c.l.b16 %v132
  %v233 = vunpack.c.l.b16 %v133
  %v234 = vunpack.c.l.b16 %v134
  %v235 = vunpack.c.l.b16 %v135
  %v236 = vunpack.c.l.b16 %v136
  %v237 = vunpack.c.l.b16 %v137
  %v238 = vunpack.c.l.b16 %v138
  %v239 = vunpack.c.l.b16 %v139
  %v240 = vunpack.c.l.b16 %v140
  %v241 = vunpack.c.l.b16 %v141
  %v242 = vunpack.c.l.b16 %v142
  %v243 = vunpack.c.l.b16 %v143
  %v244 = vunpack.c.l.b16 %v144
  %v245 = vunpack.c.l.b16 %v145
  %v246 = vunpack.c.l.b16 %v146
  %v247 = vunpack.c.l.b16 %v147
  %v248 = vunpack.c.l.b16 %v148
  %v249 = vunpack.c.l.b16 %v149
  %v250 = vunpack.c.l.b16 %v150
  %v251 = vunpack.c.l.b16 %v151
  %v252 = vunpack.c.l.b16 %v152
  %v253 = vunpack.c.l.b16 %v153
  %v254 = vunpack.c.l.b16 %v154
  %v255 = vunpack.c.l.b16 %v155
  %v256 = vunpack.c.l.b16 %v156
  %v257 = vunpack.c.l.b16 %v157
  %v258 = vunpack.c.l.b16 %v158
  %v259 = vunpack.c.l.b16 %v159
  %v260 = vunpack.c.l.b16 %v160
  %v261 = vunpack.c.l.b16 %v161
  %v262 = vpack.c.b16 %v215, %v214
  %v263 = vpack.c.b16 %v217, %v216
  %v264 = vpack.c.b16 %v219, %v218
  %v265 = vpack.c.b16 %v221, %v220
  %v266 = vpack.c.b16 %v223, %v222
  %v267 = vpack.c.b16 %v225, %v224
  %v268 = vpack.c.b16 %v227, %v226
  %v269 = vpack.c.b16 %v229, %v228
  %v270 = vpack.c.b16 %v231, %v230
  %v271 = vpack.c.b16 %v233, %v232
  %v272 = vpack.c.b16 %v235, %v234
  %v273 = vpack.c.b16 %v237, %v236
  %v274 = vpack.c.b16 %v239, %v238
  %v275 = vpack.c.b16 %v241, %v240
  %v276 = vpack.c.b16 %v243, %v242
  %v277 = vpack.c.b16 %v245, %v244
  %v278 = vpack.c.b16 %v247, %v246
  %v279 = vpack.c.b16 %v249, %v248
  %v280 = vpack.c.b16 %v251, %v250
  %v281 = vpack.c.b16 %v253, %v252
  %v282 = vpack.c.b16 %v255, %v254
  %v283 = vpack.c.b16 %v257, %v256
  %v284 = vpack.c.b16 %v259, %v258
  %v285 = vpack.c.b16 %v261, %v260
  %310 = vmatpush.bf16.msra.mxu0 %v269
  %311 = vmatpush.bf16.msra.mxu0 %v268
  %312 = vmatpush.bf16.msra.mxu0 %v267
  %313 = vmatpush.bf16.msra.mxu0 %v266
  %314 = vmatpush.bf16.msra.mxu0 %v265
  %315 = vmatpush.bf16.msra.mxu0 %v264
  %316 = vmatpush.bf16.msra.mxu0 %v263
  %317 = vmatpush.bf16.msra.mxu0 %v262
  %318 = vmatmul.bf16.gmra.mxu0 %v108
  %v319 = vpop.f32.mrf.mxu0
  %v320 = vadd.f32 %v164, %v319
  %v321 = vpop.f32.mrf.mxu0
  %v322 = vadd.f32 %v164, %v321
  %323 = vmatmul.bf16.gmra.mxu0 %v111
  %v324 = vpop.f32.mrf.mxu0
  %v325 = vadd.f32 %v164, %v324
  %v326 = vpop.f32.mrf.mxu0
  %v327 = vadd.f32 %v164, %v326
  %328 = vdwg.mxu0
  %329 = vmatpush.bf16.msra.mxu0 %v277
  %330 = vmatpush.bf16.msra.mxu0 %v276
  %331 = vmatpush.bf16.msra.mxu0 %v275
  %332 = vmatpush.bf16.msra.mxu0 %v274
  %333 = vmatpush.bf16.msra.mxu0 %v273
  %334 = vmatpush.bf16.msra.mxu0 %v272
  %335 = vmatpush.bf16.msra.mxu0 %v271
  %336 = vmatpush.bf16.msra.mxu0 %v270
  %337 = vmatmul.bf16.gmra.mxu0 %v109
  %v338 = vpop.f32.mrf.mxu0
  %v339 = vadd.f32 %v320, %v338
  %v340 = vpop.f32.mrf.mxu0
  %v341 = vadd.f32 %v322, %v340
  %342 = vmatmul.bf16.gmra.mxu0 %v112
  %v343 = vpop.f32.mrf.mxu0
  %v344 = vadd.f32 %v325, %v343
  %v345 = vpop.f32.mrf.mxu0
  %v346 = vadd.f32 %v327, %v345
  %347 = vdwg.mxu0
  %348 = vmatpush.bf16.msra.mxu0 %v285
  %349 = vmatpush.bf16.msra.mxu0 %v284
  %350 = vmatpush.bf16.msra.mxu0 %v283
  %351 = vmatpush.bf16.msra.mxu0 %v282
  %352 = vmatpush.bf16.msra.mxu0 %v281
  %353 = vmatpush.bf16.msra.mxu0 %v280
  %354 = vmatpush.bf16.msra.mxu0 %v279
  %355 = vmatpush.bf16.msra.mxu0 %v278
  %356 = vmatmul.bf16.gmra.mxu0 %v110
  %v357 = vpop.f32.mrf.mxu0
  %v358 = vadd.f32 %v339, %v357
  %v359 = vpop.f32.mrf.mxu0
  %v360 = vadd.f32 %v341, %v359
  %361 = vmatmul.bf16.gmra.mxu0 %v113
  %v362 = vpop.f32.mrf.mxu0
  %v363 = vadd.f32 %v344, %v362
  %v364 = vpop.f32.mrf.mxu0
  %v365 = vadd.f32 %v346, %v364
  %366 = vdwg.mxu0
  %v367 = vmax.f32 %v358, 0.0
  %v368 = vmax.f32 %v360, 0.0
  %v369 = vmax.f32 %v363, 0.0
  %v370 = vmax.f32 %v365, 0.0
  %v371 = vld [vmem:[%s2] sm:$0xf]
  %v372 = vld [vmem:[%s2 + $0x4] sm:$0xf]
  %v373 = vld [vmem:[%s2 + $0x8] sm:$0xf]
  %v374 = vld [vmem:[%s2 + $0xc] sm:$0xf]
  %v375 = vld [vmem:[%s2 + $0x10] sm:$0xf]
  %v376 = vld [vmem:[%s2 + $0x14] sm:$0xf]
  %v377 = vld [vmem:[%s2 + $0x18] sm:$0xf]
  %v378 = vld [vmem:[%s2 + $0x1c] sm:$0xf]
  %v379 = vld [vmem:[%s2 + $0x20] sm:$0xf]
  %v380 = vld [vmem:[%s2 + $0x24] sm:$0xf]
  %v381 = vld [vmem:[%s2 + $0x28] sm:$0xf]
  %v382 = vld [vmem:[%s2 + $0x2c] sm:$0xf]
  %v383 = vld [vmem:[%s2 + $0x30] sm:$0xf]
  %v384 = vld [vmem:[%s2 + $0x34] sm:$0xf]
  %v385 = vld [vmem:[%s2 + $0x38] sm:$0xf]
  %v386 = vld [vmem:[%s2 + $0x3c] sm:$0xf]
  %s387 = scalar_lea.vmem %s3, 2
  %v388 = vld [vmem:[%s387] sm:$0x1]
  %v390 = vperm.slane %v388, 0
  %v408 = vunpack.c.l.b16 %v371
  %v409 = vunpack.c.l.b16 %v372
  %v410 = vunpack.c.l.b16 %v373
  %v411 = vunpack.c.l.b16 %v374
  %v412 = vunpack.c.l.b16 %v375
  %v413 = vunpack.c.l.b16 %v376
  %v414 = vunpack.c.l.b16 %v377
  %v415 = vunpack.c.l.b16 %v378
  %v416 = vunpack.c.l.b16 %v379
  %v417 = vunpack.c.l.b16 %v380
  %v418 = vunpack.c.l.b16 %v381
  %v419 = vunpack.c.l.b16 %v382
  %v420 = vunpack.c.l.b16 %v383
  %v421 = vunpack.c.l.b16 %v384
  %v422 = vunpack.c.l.b16 %v385
  %v423 = vunpack.c.l.b16 %v386
  %v424 = vpack.c.b16 %v409, %v408
  %v425 = vpack.c.b16 %v411, %v410
  %v426 = vpack.c.b16 %v413, %v412
  %v427 = vpack.c.b16 %v415, %v414
  %v428 = vpack.c.b16 %v417, %v416
  %v429 = vpack.c.b16 %v419, %v418
  %v430 = vpack.c.b16 %v421, %v420
  %v431 = vpack.c.b16 %v423, %v422
  %440 = vmatpush.bf16.msra.mxu0 %v431
  %441 = vmatpush.bf16.msra.mxu0 %v430
  %442 = vmatpush.bf16.msra.mxu0 %v429
  %443 = vmatpush.bf16.msra.mxu0 %v428
  %444 = vmatpush.bf16.msra.mxu0 %v427
  %445 = vmatpush.bf16.msra.mxu0 %v426
  %446 = vmatpush.bf16.msra.mxu0 %v425
  %447 = vmatpush.bf16.msra.mxu0 %v424
  %448 = vmatmul.bf16.gmra.mxu0 %v109
  %v449 = vpop.f32.mrf.mxu0
  %v450 = vadd.f32 %v390, %v449
  %v451 = vpop.f32.mrf.mxu0
  %v452 = vadd.f32 %v390, %v451
  %453 = vmatmul.bf16.gmra.mxu0 %v112
  %v454 = vpop.f32.mrf.mxu0
  %v455 = vadd.f32 %v390, %v454
  %v456 = vpop.f32.mrf.mxu0
  %v457 = vadd.f32 %v390, %v456
  %458 = vdwg.mxu0
  %v459 = vrot.slane %v367, 7
  %v460 = vrot.slane %v368, 7
  %v461 = vrot.slane %v369, 7
  %v462 = vrot.slane %v370, 7
  %v463 = vsel %vm86, %v461, %v462
  %v464 = vsel %vm86, %v460, %v461
  %v465 = vsel %vm86, %v459, %v460
  %v466 = vsel %vm86, %v462, %v459
  %v467 = vsel %vm74, %v466, 0.0
  %v468 = vsel %vm75, %v465, 0.0
  %v469 = vsel %vm76, %v464, 0.0
  %v470 = vsel %vm77, %v463, 0.0
  %v471 = vrot.slane %v367, 1
  %v472 = vrot.slane %v368, 1
  %v473 = vrot.slane %v369, 1
  %v474 = vrot.slane %v370, 1
  %v475 = vsel %vm99, %v473, %v474
  %v476 = vsel %vm99, %v472, %v473
  %v477 = vsel %vm99, %v471, %v472
  %v478 = vsel %vm99, %v474, %v471
  %v479 = vsel %vm78, %v477, 0.0
  %v480 = vsel %vm79, %v476, 0.0
  %v481 = vsel %vm80, %v475, 0.0
  %v482 = vsel %vm81, %v478, 0.0
  %v483 = vpack.c.bf16 %v468, %v467
  %v484 = vpack.c.bf16 %v368, %v367
  %v485 = vpack.c.bf16 %v480, %v479
  %v486 = vpack.c.bf16 %v470, %v469
  %v487 = vpack.c.bf16 %v370, %v369
  %v488 = vpack.c.bf16 %v482, %v481
  %s489 = scalar_lea.vmem %s1, 192
  %v490 = vld [vmem:[%s489] sm:$0xf]
  %v491 = vld [vmem:[%s489 + $0x4] sm:$0xf]
  %v492 = vld [vmem:[%s489 + $0x8] sm:$0xf]
  %v493 = vld [vmem:[%s489 + $0xc] sm:$0xf]
  %v494 = vld [vmem:[%s489 + $0x10] sm:$0xf]
  %v495 = vld [vmem:[%s489 + $0x14] sm:$0xf]
  %v496 = vld [vmem:[%s489 + $0x18] sm:$0xf]
  %v497 = vld [vmem:[%s489 + $0x1c] sm:$0xf]
  %v498 = vld [vmem:[%s489 + $0x20] sm:$0xf]
  %v499 = vld [vmem:[%s489 + $0x24] sm:$0xf]
  %v500 = vld [vmem:[%s489 + $0x28] sm:$0xf]
  %v501 = vld [vmem:[%s489 + $0x2c] sm:$0xf]
  %v502 = vld [vmem:[%s489 + $0x30] sm:$0xf]
  %v503 = vld [vmem:[%s489 + $0x34] sm:$0xf]
  %v504 = vld [vmem:[%s489 + $0x38] sm:$0xf]
  %v505 = vld [vmem:[%s489 + $0x3c] sm:$0xf]
  %v506 = vld [vmem:[%s489 + $0x40] sm:$0xf]
  %v507 = vld [vmem:[%s489 + $0x44] sm:$0xf]
  %v508 = vld [vmem:[%s489 + $0x48] sm:$0xf]
  %v509 = vld [vmem:[%s489 + $0x4c] sm:$0xf]
  %v510 = vld [vmem:[%s489 + $0x50] sm:$0xf]
  %v511 = vld [vmem:[%s489 + $0x54] sm:$0xf]
  %v512 = vld [vmem:[%s489 + $0x58] sm:$0xf]
  %v513 = vld [vmem:[%s489 + $0x5c] sm:$0xf]
  %v514 = vld [vmem:[%s489 + $0x60] sm:$0xf]
  %v515 = vld [vmem:[%s489 + $0x64] sm:$0xf]
  %v516 = vld [vmem:[%s489 + $0x68] sm:$0xf]
  %v517 = vld [vmem:[%s489 + $0x6c] sm:$0xf]
  %v518 = vld [vmem:[%s489 + $0x70] sm:$0xf]
  %v519 = vld [vmem:[%s489 + $0x74] sm:$0xf]
  %v520 = vld [vmem:[%s489 + $0x78] sm:$0xf]
  %v521 = vld [vmem:[%s489 + $0x7c] sm:$0xf]
  %v522 = vld [vmem:[%s489 + $0x80] sm:$0xf]
  %v523 = vld [vmem:[%s489 + $0x84] sm:$0xf]
  %v524 = vld [vmem:[%s489 + $0x88] sm:$0xf]
  %v525 = vld [vmem:[%s489 + $0x8c] sm:$0xf]
  %v526 = vld [vmem:[%s489 + $0x90] sm:$0xf]
  %v527 = vld [vmem:[%s489 + $0x94] sm:$0xf]
  %v528 = vld [vmem:[%s489 + $0x98] sm:$0xf]
  %v529 = vld [vmem:[%s489 + $0x9c] sm:$0xf]
  %v530 = vld [vmem:[%s489 + $0xa0] sm:$0xf]
  %v531 = vld [vmem:[%s489 + $0xa4] sm:$0xf]
  %v532 = vld [vmem:[%s489 + $0xa8] sm:$0xf]
  %v533 = vld [vmem:[%s489 + $0xac] sm:$0xf]
  %v534 = vld [vmem:[%s489 + $0xb0] sm:$0xf]
  %v535 = vld [vmem:[%s489 + $0xb4] sm:$0xf]
  %v536 = vld [vmem:[%s489 + $0xb8] sm:$0xf]
  %v537 = vld [vmem:[%s489 + $0xbc] sm:$0xf]
  %s538 = scalar_lea.vmem %s3, 1
  %v539 = vld [vmem:[%s538] sm:$0x1]
  %v541 = vperm.slane %v539, 0
  %v591 = vunpack.c.l.b16 %v490
  %v592 = vunpack.c.l.b16 %v491
  %v593 = vunpack.c.l.b16 %v492
  %v594 = vunpack.c.l.b16 %v493
  %v595 = vunpack.c.l.b16 %v494
  %v596 = vunpack.c.l.b16 %v495
  %v597 = vunpack.c.l.b16 %v496
  %v598 = vunpack.c.l.b16 %v497
  %v599 = vunpack.c.l.b16 %v498
  %v600 = vunpack.c.l.b16 %v499
  %v601 = vunpack.c.l.b16 %v500
  %v602 = vunpack.c.l.b16 %v501
  %v603 = vunpack.c.l.b16 %v502
  %v604 = vunpack.c.l.b16 %v503
  %v605 = vunpack.c.l.b16 %v504
  %v606 = vunpack.c.l.b16 %v505
  %v607 = vunpack.c.l.b16 %v506
  %v608 = vunpack.c.l.b16 %v507
  %v609 = vunpack.c.l.b16 %v508
  %v610 = vunpack.c.l.b16 %v509
  %v611 = vunpack.c.l.b16 %v510
  %v612 = vunpack.c.l.b16 %v511
  %v613 = vunpack.c.l.b16 %v512
  %v614 = vunpack.c.l.b16 %v513
  %v615 = vunpack.c.l.b16 %v514
  %v616 = vunpack.c.l.b16 %v515
  %v617 = vunpack.c.l.b16 %v516
  %v618 = vunpack.c.l.b16 %v517
  %v619 = vunpack.c.l.b16 %v518
  %v620 = vunpack.c.l.b16 %v519
  %v621 = vunpack.c.l.b16 %v520
  %v622 = vunpack.c.l.b16 %v521
  %v623 = vunpack.c.l.b16 %v522
  %v624 = vunpack.c.l.b16 %v523
  %v625 = vunpack.c.l.b16 %v524
  %v626 = vunpack.c.l.b16 %v525
  %v627 = vunpack.c.l.b16 %v526
  %v628 = vunpack.c.l.b16 %v527
  %v629 = vunpack.c.l.b16 %v528
  %v630 = vunpack.c.l.b16 %v529
  %v631 = vunpack.c.l.b16 %v530
  %v632 = vunpack.c.l.b16 %v531
  %v633 = vunpack.c.l.b16 %v532
  %v634 = vunpack.c.l.b16 %v533
  %v635 = vunpack.c.l.b16 %v534
  %v636 = vunpack.c.l.b16 %v535
  %v637 = vunpack.c.l.b16 %v536
  %v638 = vunpack.c.l.b16 %v537
  %v639 = vpack.c.b16 %v592, %v591
  %v640 = vpack.c.b16 %v594, %v593
  %v641 = vpack.c.b16 %v596, %v595
  %v642 = vpack.c.b16 %v598, %v597
  %v643 = vpack.c.b16 %v600, %v599
  %v644 = vpack.c.b16 %v602, %v601
  %v645 = vpack.c.b16 %v604, %v603
  %v646 = vpack.c.b16 %v606, %v605
  %v647 = vpack.c.b16 %v608, %v607
  %v648 = vpack.c.b16 %v610, %v609
  %v649 = vpack.c.b16 %v612, %v611
  %v650 = vpack.c.b16 %v614, %v613
  %v651 = vpack.c.b16 %v616, %v615
  %v652 = vpack.c.b16 %v618, %v617
  %v653 = vpack.c.b16 %v620, %v619
  %v654 = vpack.c.b16 %v622, %v621
  %v655 = vpack.c.b16 %v624, %v623
  %v656 = vpack.c.b16 %v626, %v625
  %v657 = vpack.c.b16 %v628, %v627
  %v658 = vpack.c.b16 %v630, %v629
  %v659 = vpack.c.b16 %v632, %v631
  %v660 = vpack.c.b16 %v634, %v633
  %v661 = vpack.c.b16 %v636, %v635
  %v662 = vpack.c.b16 %v638, %v637
  %687 = vmatpush.bf16.msra.mxu0 %v646
  %688 = vmatpush.bf16.msra.mxu0 %v645
  %689 = vmatpush.bf16.msra.mxu0 %v644
  %690 = vmatpush.bf16.msra.mxu0 %v643
  %691 = vmatpush.bf16.msra.mxu0 %v642
  %692 = vmatpush.bf16.msra.mxu0 %v641
  %693 = vmatpush.bf16.msra.mxu0 %v640
  %694 = vmatpush.bf16.msra.mxu0 %v639
  %695 = vmatmul.bf16.gmra.mxu0 %v483
  %v696 = vpop.f32.mrf.mxu0
  %v697 = vadd.f32 %v541, %v696
  %v698 = vpop.f32.mrf.mxu0
  %v699 = vadd.f32 %v541, %v698
  %700 = vmatmul.bf16.gmra.mxu0 %v486
  %v701 = vpop.f32.mrf.mxu0
  %v702 = vadd.f32 %v541, %v701
  %v703 = vpop.f32.mrf.mxu0
  %v704 = vadd.f32 %v541, %v703
  %705 = vdwg.mxu0
  %706 = vmatpush.bf16.msra.mxu0 %v654
  %707 = vmatpush.bf16.msra.mxu0 %v653
  %708 = vmatpush.bf16.msra.mxu0 %v652
  %709 = vmatpush.bf16.msra.mxu0 %v651
  %710 = vmatpush.bf16.msra.mxu0 %v650
  %711 = vmatpush.bf16.msra.mxu0 %v649
  %712 = vmatpush.bf16.msra.mxu0 %v648
  %713 = vmatpush.bf16.msra.mxu0 %v647
  %714 = vmatmul.bf16.gmra.mxu0 %v484
  %v715 = vpop.f32.mrf.mxu0
  %v716 = vadd.f32 %v697, %v715
  %v717 = vpop.f32.mrf.mxu0
  %v718 = vadd.f32 %v699, %v717
  %719 = vmatmul.bf16.gmra.mxu0 %v487
  %v720 = vpop.f32.mrf.mxu0
  %v721 = vadd.f32 %v702, %v720
  %v722 = vpop.f32.mrf.mxu0
  %v723 = vadd.f32 %v704, %v722
  %724 = vdwg.mxu0
  %725 = vmatpush.bf16.msra.mxu0 %v662
  %726 = vmatpush.bf16.msra.mxu0 %v661
  %727 = vmatpush.bf16.msra.mxu0 %v660
  %728 = vmatpush.bf16.msra.mxu0 %v659
  %729 = vmatpush.bf16.msra.mxu0 %v658
  %730 = vmatpush.bf16.msra.mxu0 %v657
  %731 = vmatpush.bf16.msra.mxu0 %v656
  %732 = vmatpush.bf16.msra.mxu0 %v655
  %733 = vmatmul.bf16.gmra.mxu0 %v485
  %v734 = vpop.f32.mrf.mxu0
  %v735 = vadd.f32 %v716, %v734
  %v736 = vpop.f32.mrf.mxu0
  %v737 = vadd.f32 %v718, %v736
  %738 = vmatmul.bf16.gmra.mxu0 %v488
  %v739 = vpop.f32.mrf.mxu0
  %v740 = vadd.f32 %v721, %v739
  %v741 = vpop.f32.mrf.mxu0
  %v742 = vadd.f32 %v723, %v741
  %743 = vdwg.mxu0
  %v744 = vadd.f32 %v735, %v450
  %v745 = vadd.f32 %v737, %v452
  %v746 = vadd.f32 %v740, %v455
  %v747 = vadd.f32 %v742, %v457
  %v748 = vmax.f32 %v744, 0.0
  %v749 = vmax.f32 %v745, 0.0
  %v750 = vmax.f32 %v746, 0.0
  %v751 = vmax.f32 %v747, 0.0
  %v752 = vrot.slane %v748, 7
  %v753 = vrot.slane %v749, 7
  %v754 = vrot.slane %v750, 7
  %v755 = vrot.slane %v751, 7
  %v756 = vsel %vm86, %v754, %v755
  %v757 = vsel %vm86, %v753, %v754
  %v758 = vsel %vm86, %v752, %v753
  %v759 = vsel %vm86, %v755, %v752
  %v760 = vsel %vm74, %v759, 0.0
  %v761 = vsel %vm75, %v758, 0.0
  %v762 = vsel %vm76, %v757, 0.0
  %v763 = vsel %vm77, %v756, 0.0
  %v764 = vrot.slane %v748, 1
  %v765 = vrot.slane %v749, 1
  %v766 = vrot.slane %v750, 1
  %v767 = vrot.slane %v751, 1
  %v768 = vsel %vm99, %v766, %v767
  %v769 = vsel %vm99, %v765, %v766
  %v770 = vsel %vm99, %v764, %v765
  %v771 = vsel %vm99, %v767, %v764
  %v772 = vsel %vm78, %v770, 0.0
  %v773 = vsel %vm79, %v769, 0.0
  %v774 = vsel %vm80, %v768, 0.0
  %v775 = vsel %vm81, %v771, 0.0
  %v776 = vpack.c.bf16 %v761, %v760
  %v777 = vpack.c.bf16 %v749, %v748
  %v778 = vpack.c.bf16 %v773, %v772
  %v779 = vpack.c.bf16 %v763, %v762
  %v780 = vpack.c.bf16 %v751, %v750
  %v781 = vpack.c.bf16 %v775, %v774
  %s782 = scalar_lea.vmem %s1, 384
  %v783 = vld [vmem:[%s782] sm:$0xf]
  %v784 = vld [vmem:[%s782 + $0x4] sm:$0xf]
  %v785 = vld [vmem:[%s782 + $0x8] sm:$0xf]
  %v786 = vld [vmem:[%s782 + $0xc] sm:$0xf]
  %v787 = vld [vmem:[%s782 + $0x10] sm:$0xf]
  %v788 = vld [vmem:[%s782 + $0x14] sm:$0xf]
  %v789 = vld [vmem:[%s782 + $0x18] sm:$0xf]
  %v790 = vld [vmem:[%s782 + $0x1c] sm:$0xf]
  %v791 = vld [vmem:[%s782 + $0x20] sm:$0xf]
  %v792 = vld [vmem:[%s782 + $0x24] sm:$0xf]
  %v793 = vld [vmem:[%s782 + $0x28] sm:$0xf]
  %v794 = vld [vmem:[%s782 + $0x2c] sm:$0xf]
  %v795 = vld [vmem:[%s782 + $0x30] sm:$0xf]
  %v796 = vld [vmem:[%s782 + $0x34] sm:$0xf]
  %v797 = vld [vmem:[%s782 + $0x38] sm:$0xf]
  %v798 = vld [vmem:[%s782 + $0x3c] sm:$0xf]
  %v799 = vld [vmem:[%s782 + $0x40] sm:$0xf]
  %v800 = vld [vmem:[%s782 + $0x44] sm:$0xf]
  %v801 = vld [vmem:[%s782 + $0x48] sm:$0xf]
  %v802 = vld [vmem:[%s782 + $0x4c] sm:$0xf]
  %v803 = vld [vmem:[%s782 + $0x50] sm:$0xf]
  %v804 = vld [vmem:[%s782 + $0x54] sm:$0xf]
  %v805 = vld [vmem:[%s782 + $0x58] sm:$0xf]
  %v806 = vld [vmem:[%s782 + $0x5c] sm:$0xf]
  %v807 = vld [vmem:[%s782 + $0x60] sm:$0xf]
  %v808 = vld [vmem:[%s782 + $0x64] sm:$0xf]
  %v809 = vld [vmem:[%s782 + $0x68] sm:$0xf]
  %v810 = vld [vmem:[%s782 + $0x6c] sm:$0xf]
  %v811 = vld [vmem:[%s782 + $0x70] sm:$0xf]
  %v812 = vld [vmem:[%s782 + $0x74] sm:$0xf]
  %v813 = vld [vmem:[%s782 + $0x78] sm:$0xf]
  %v814 = vld [vmem:[%s782 + $0x7c] sm:$0xf]
  %v815 = vld [vmem:[%s782 + $0x80] sm:$0xf]
  %v816 = vld [vmem:[%s782 + $0x84] sm:$0xf]
  %v817 = vld [vmem:[%s782 + $0x88] sm:$0xf]
  %v818 = vld [vmem:[%s782 + $0x8c] sm:$0xf]
  %v819 = vld [vmem:[%s782 + $0x90] sm:$0xf]
  %v820 = vld [vmem:[%s782 + $0x94] sm:$0xf]
  %v821 = vld [vmem:[%s782 + $0x98] sm:$0xf]
  %v822 = vld [vmem:[%s782 + $0x9c] sm:$0xf]
  %v823 = vld [vmem:[%s782 + $0xa0] sm:$0xf]
  %v824 = vld [vmem:[%s782 + $0xa4] sm:$0xf]
  %v825 = vld [vmem:[%s782 + $0xa8] sm:$0xf]
  %v826 = vld [vmem:[%s782 + $0xac] sm:$0xf]
  %v827 = vld [vmem:[%s782 + $0xb0] sm:$0xf]
  %v828 = vld [vmem:[%s782 + $0xb4] sm:$0xf]
  %v829 = vld [vmem:[%s782 + $0xb8] sm:$0xf]
  %v830 = vld [vmem:[%s782 + $0xbc] sm:$0xf]
  %s831 = scalar_lea.vmem %s3, 3
  %v832 = vld [vmem:[%s831] sm:$0x1]
  %v834 = vperm.slane %v832, 0
  %v884 = vunpack.c.l.b16 %v783
  %v885 = vunpack.c.l.b16 %v784
  %v886 = vunpack.c.l.b16 %v785
  %v887 = vunpack.c.l.b16 %v786
  %v888 = vunpack.c.l.b16 %v787
  %v889 = vunpack.c.l.b16 %v788
  %v890 = vunpack.c.l.b16 %v789
  %v891 = vunpack.c.l.b16 %v790
  %v892 = vunpack.c.l.b16 %v791
  %v893 = vunpack.c.l.b16 %v792
  %v894 = vunpack.c.l.b16 %v793
  %v895 = vunpack.c.l.b16 %v794
  %v896 = vunpack.c.l.b16 %v795
  %v897 = vunpack.c.l.b16 %v796
  %v898 = vunpack.c.l.b16 %v797
  %v899 = vunpack.c.l.b16 %v798
  %v900 = vunpack.c.l.b16 %v799
  %v901 = vunpack.c.l.b16 %v800
  %v902 = vunpack.c.l.b16 %v801
  %v903 = vunpack.c.l.b16 %v802
  %v904 = vunpack.c.l.b16 %v803
  %v905 = vunpack.c.l.b16 %v804
  %v906 = vunpack.c.l.b16 %v805
  %v907 = vunpack.c.l.b16 %v806
  %v908 = vunpack.c.l.b16 %v807
  %v909 = vunpack.c.l.b16 %v808
  %v910 = vunpack.c.l.b16 %v809
  %v911 = vunpack.c.l.b16 %v810
  %v912 = vunpack.c.l.b16 %v811
  %v913 = vunpack.c.l.b16 %v812
  %v914 = vunpack.c.l.b16 %v813
  %v915 = vunpack.c.l.b16 %v814
  %v916 = vunpack.c.l.b16 %v815
  %v917 = vunpack.c.l.b16 %v816
  %v918 = vunpack.c.l.b16 %v817
  %v919 = vunpack.c.l.b16 %v818
  %v920 = vunpack.c.l.b16 %v819
  %v921 = vunpack.c.l.b16 %v820
  %v922 = vunpack.c.l.b16 %v821
  %v923 = vunpack.c.l.b16 %v822
  %v924 = vunpack.c.l.b16 %v823
  %v925 = vunpack.c.l.b16 %v824
  %v926 = vunpack.c.l.b16 %v825
  %v927 = vunpack.c.l.b16 %v826
  %v928 = vunpack.c.l.b16 %v827
  %v929 = vunpack.c.l.b16 %v828
  %v930 = vunpack.c.l.b16 %v829
  %v931 = vunpack.c.l.b16 %v830
  %v932 = vpack.c.b16 %v885, %v884
  %v933 = vpack.c.b16 %v887, %v886
  %v934 = vpack.c.b16 %v889, %v888
  %v935 = vpack.c.b16 %v891, %v890
  %v936 = vpack.c.b16 %v893, %v892
  %v937 = vpack.c.b16 %v895, %v894
  %v938 = vpack.c.b16 %v897, %v896
  %v939 = vpack.c.b16 %v899, %v898
  %v940 = vpack.c.b16 %v901, %v900
  %v941 = vpack.c.b16 %v903, %v902
  %v942 = vpack.c.b16 %v905, %v904
  %v943 = vpack.c.b16 %v907, %v906
  %v944 = vpack.c.b16 %v909, %v908
  %v945 = vpack.c.b16 %v911, %v910
  %v946 = vpack.c.b16 %v913, %v912
  %v947 = vpack.c.b16 %v915, %v914
  %v948 = vpack.c.b16 %v917, %v916
  %v949 = vpack.c.b16 %v919, %v918
  %v950 = vpack.c.b16 %v921, %v920
  %v951 = vpack.c.b16 %v923, %v922
  %v952 = vpack.c.b16 %v925, %v924
  %v953 = vpack.c.b16 %v927, %v926
  %v954 = vpack.c.b16 %v929, %v928
  %v955 = vpack.c.b16 %v931, %v930
  %980 = vmatpush.bf16.msra.mxu0 %v939
  %981 = vmatpush.bf16.msra.mxu0 %v938
  %982 = vmatpush.bf16.msra.mxu0 %v937
  %983 = vmatpush.bf16.msra.mxu0 %v936
  %984 = vmatpush.bf16.msra.mxu0 %v935
  %985 = vmatpush.bf16.msra.mxu0 %v934
  %986 = vmatpush.bf16.msra.mxu0 %v933
  %987 = vmatpush.bf16.msra.mxu0 %v932
  %988 = vmatmul.bf16.gmra.mxu0 %v776
  %v989 = vpop.f32.mrf.mxu0
  %v990 = vadd.f32 %v834, %v989
  %v991 = vpop.f32.mrf.mxu0
  %v992 = vadd.f32 %v834, %v991
  %993 = vmatmul.bf16.gmra.mxu0 %v779
  %v994 = vpop.f32.mrf.mxu0
  %v995 = vadd.f32 %v834, %v994
  %v996 = vpop.f32.mrf.mxu0
  %v997 = vadd.f32 %v834, %v996
  %998 = vdwg.mxu0
  %999 = vmatpush.bf16.msra.mxu0 %v947
  %1000 = vmatpush.bf16.msra.mxu0 %v946
  %1001 = vmatpush.bf16.msra.mxu0 %v945
  %1002 = vmatpush.bf16.msra.mxu0 %v944
  %1003 = vmatpush.bf16.msra.mxu0 %v943
  %1004 = vmatpush.bf16.msra.mxu0 %v942
  %1005 = vmatpush.bf16.msra.mxu0 %v941
  %1006 = vmatpush.bf16.msra.mxu0 %v940
  %1007 = vmatmul.bf16.gmra.mxu0 %v777
  %v1008 = vpop.f32.mrf.mxu0
  %v1009 = vadd.f32 %v990, %v1008
  %v1010 = vpop.f32.mrf.mxu0
  %v1011 = vadd.f32 %v992, %v1010
  %1012 = vmatmul.bf16.gmra.mxu0 %v780
  %v1013 = vpop.f32.mrf.mxu0
  %v1014 = vadd.f32 %v995, %v1013
  %v1015 = vpop.f32.mrf.mxu0
  %v1016 = vadd.f32 %v997, %v1015
  %1017 = vdwg.mxu0
  %1018 = vmatpush.bf16.msra.mxu0 %v955
  %1019 = vmatpush.bf16.msra.mxu0 %v954
  %1020 = vmatpush.bf16.msra.mxu0 %v953
  %1021 = vmatpush.bf16.msra.mxu0 %v952
  %1022 = vmatpush.bf16.msra.mxu0 %v951
  %1023 = vmatpush.bf16.msra.mxu0 %v950
  %1024 = vmatpush.bf16.msra.mxu0 %v949
  %1025 = vmatpush.bf16.msra.mxu0 %v948
  %1026 = vmatmul.bf16.gmra.mxu0 %v778
  %v1027 = vpop.f32.mrf.mxu0
  %v1028 = vadd.f32 %v1009, %v1027
  %v1029 = vpop.f32.mrf.mxu0
  %v1030 = vadd.f32 %v1011, %v1029
  %1031 = vmatmul.bf16.gmra.mxu0 %v781
  %v1032 = vpop.f32.mrf.mxu0
  %v1033 = vadd.f32 %v1014, %v1032
  %v1034 = vpop.f32.mrf.mxu0
  %v1035 = vadd.f32 %v1016, %v1034
  %1036 = vdwg.mxu0
  %v1037 = vmax.f32 %v1028, 0.0
  %v1038 = vmax.f32 %v1030, 0.0
  %v1039 = vmax.f32 %v1033, 0.0
  %v1040 = vmax.f32 %v1035, 0.0
  %v1041 = vrot.slane %v1037, 7
  %v1042 = vrot.slane %v1038, 7
  %v1043 = vrot.slane %v1039, 7
  %v1044 = vrot.slane %v1040, 7
  %v1045 = vsel %vm86, %v1043, %v1044
  %v1046 = vsel %vm86, %v1042, %v1043
  %v1047 = vsel %vm86, %v1041, %v1042
  %v1048 = vsel %vm86, %v1044, %v1041
  %v1049 = vsel %vm74, %v1048, 0.0
  %v1050 = vsel %vm75, %v1047, 0.0
  %v1051 = vsel %vm76, %v1046, 0.0
  %v1052 = vsel %vm77, %v1045, 0.0
  %v1053 = vrot.slane %v1037, 1
  %v1054 = vrot.slane %v1038, 1
  %v1055 = vrot.slane %v1039, 1
  %v1056 = vrot.slane %v1040, 1
  %v1057 = vsel %vm99, %v1055, %v1056
  %v1058 = vsel %vm99, %v1054, %v1055
  %v1059 = vsel %vm99, %v1053, %v1054
  %v1060 = vsel %vm99, %v1056, %v1053
  %v1061 = vsel %vm78, %v1059, 0.0
  %v1062 = vsel %vm79, %v1058, 0.0
  %v1063 = vsel %vm80, %v1057, 0.0
  %v1064 = vsel %vm81, %v1060, 0.0
  %v1065 = vpack.c.bf16 %v1050, %v1049
  %v1066 = vpack.c.bf16 %v1038, %v1037
  %v1067 = vpack.c.bf16 %v1062, %v1061
  %v1068 = vpack.c.bf16 %v1052, %v1051
  %v1069 = vpack.c.bf16 %v1040, %v1039
  %v1070 = vpack.c.bf16 %v1064, %v1063
  %s1071 = scalar_lea.vmem %s1, 576
  %v1072 = vld [vmem:[%s1071] sm:$0xf]
  %v1073 = vld [vmem:[%s1071 + $0x4] sm:$0xf]
  %v1074 = vld [vmem:[%s1071 + $0x8] sm:$0xf]
  %v1075 = vld [vmem:[%s1071 + $0xc] sm:$0xf]
  %v1076 = vld [vmem:[%s1071 + $0x10] sm:$0xf]
  %v1077 = vld [vmem:[%s1071 + $0x14] sm:$0xf]
  %v1078 = vld [vmem:[%s1071 + $0x18] sm:$0xf]
  %v1079 = vld [vmem:[%s1071 + $0x1c] sm:$0xf]
  %v1080 = vld [vmem:[%s1071 + $0x20] sm:$0xf]
  %v1081 = vld [vmem:[%s1071 + $0x24] sm:$0xf]
  %v1082 = vld [vmem:[%s1071 + $0x28] sm:$0xf]
  %v1083 = vld [vmem:[%s1071 + $0x2c] sm:$0xf]
  %v1084 = vld [vmem:[%s1071 + $0x30] sm:$0xf]
  %v1085 = vld [vmem:[%s1071 + $0x34] sm:$0xf]
  %v1086 = vld [vmem:[%s1071 + $0x38] sm:$0xf]
  %v1087 = vld [vmem:[%s1071 + $0x3c] sm:$0xf]
  %v1088 = vld [vmem:[%s1071 + $0x40] sm:$0xf]
  %v1089 = vld [vmem:[%s1071 + $0x44] sm:$0xf]
  %v1090 = vld [vmem:[%s1071 + $0x48] sm:$0xf]
  %v1091 = vld [vmem:[%s1071 + $0x4c] sm:$0xf]
  %v1092 = vld [vmem:[%s1071 + $0x50] sm:$0xf]
  %v1093 = vld [vmem:[%s1071 + $0x54] sm:$0xf]
  %v1094 = vld [vmem:[%s1071 + $0x58] sm:$0xf]
  %v1095 = vld [vmem:[%s1071 + $0x5c] sm:$0xf]
  %v1096 = vld [vmem:[%s1071 + $0x60] sm:$0xf]
  %v1097 = vld [vmem:[%s1071 + $0x64] sm:$0xf]
  %v1098 = vld [vmem:[%s1071 + $0x68] sm:$0xf]
  %v1099 = vld [vmem:[%s1071 + $0x6c] sm:$0xf]
  %v1100 = vld [vmem:[%s1071 + $0x70] sm:$0xf]
  %v1101 = vld [vmem:[%s1071 + $0x74] sm:$0xf]
  %v1102 = vld [vmem:[%s1071 + $0x78] sm:$0xf]
  %v1103 = vld [vmem:[%s1071 + $0x7c] sm:$0xf]
  %v1104 = vld [vmem:[%s1071 + $0x80] sm:$0xf]
  %v1105 = vld [vmem:[%s1071 + $0x84] sm:$0xf]
  %v1106 = vld [vmem:[%s1071 + $0x88] sm:$0xf]
  %v1107 = vld [vmem:[%s1071 + $0x8c] sm:$0xf]
  %v1108 = vld [vmem:[%s1071 + $0x90] sm:$0xf]
  %v1109 = vld [vmem:[%s1071 + $0x94] sm:$0xf]
  %v1110 = vld [vmem:[%s1071 + $0x98] sm:$0xf]
  %v1111 = vld [vmem:[%s1071 + $0x9c] sm:$0xf]
  %v1112 = vld [vmem:[%s1071 + $0xa0] sm:$0xf]
  %v1113 = vld [vmem:[%s1071 + $0xa4] sm:$0xf]
  %v1114 = vld [vmem:[%s1071 + $0xa8] sm:$0xf]
  %v1115 = vld [vmem:[%s1071 + $0xac] sm:$0xf]
  %v1116 = vld [vmem:[%s1071 + $0xb0] sm:$0xf]
  %v1117 = vld [vmem:[%s1071 + $0xb4] sm:$0xf]
  %v1118 = vld [vmem:[%s1071 + $0xb8] sm:$0xf]
  %v1119 = vld [vmem:[%s1071 + $0xbc] sm:$0xf]
  %s1120 = scalar_lea.vmem %s3, 4
  %v1121 = vld [vmem:[%s1120] sm:$0x1]
  %v1123 = vperm.slane %v1121, 0
  %v1173 = vunpack.c.l.b16 %v1072
  %v1174 = vunpack.c.l.b16 %v1073
  %v1175 = vunpack.c.l.b16 %v1074
  %v1176 = vunpack.c.l.b16 %v1075
  %v1177 = vunpack.c.l.b16 %v1076
  %v1178 = vunpack.c.l.b16 %v1077
  %v1179 = vunpack.c.l.b16 %v1078
  %v1180 = vunpack.c.l.b16 %v1079
  %v1181 = vunpack.c.l.b16 %v1080
  %v1182 = vunpack.c.l.b16 %v1081
  %v1183 = vunpack.c.l.b16 %v1082
  %v1184 = vunpack.c.l.b16 %v1083
  %v1185 = vunpack.c.l.b16 %v1084
  %v1186 = vunpack.c.l.b16 %v1085
  %v1187 = vunpack.c.l.b16 %v1086
  %v1188 = vunpack.c.l.b16 %v1087
  %v1189 = vunpack.c.l.b16 %v1088
  %v1190 = vunpack.c.l.b16 %v1089
  %v1191 = vunpack.c.l.b16 %v1090
  %v1192 = vunpack.c.l.b16 %v1091
  %v1193 = vunpack.c.l.b16 %v1092
  %v1194 = vunpack.c.l.b16 %v1093
  %v1195 = vunpack.c.l.b16 %v1094
  %v1196 = vunpack.c.l.b16 %v1095
  %v1197 = vunpack.c.l.b16 %v1096
  %v1198 = vunpack.c.l.b16 %v1097
  %v1199 = vunpack.c.l.b16 %v1098
  %v1200 = vunpack.c.l.b16 %v1099
  %v1201 = vunpack.c.l.b16 %v1100
  %v1202 = vunpack.c.l.b16 %v1101
  %v1203 = vunpack.c.l.b16 %v1102
  %v1204 = vunpack.c.l.b16 %v1103
  %v1205 = vunpack.c.l.b16 %v1104
  %v1206 = vunpack.c.l.b16 %v1105
  %v1207 = vunpack.c.l.b16 %v1106
  %v1208 = vunpack.c.l.b16 %v1107
  %v1209 = vunpack.c.l.b16 %v1108
  %v1210 = vunpack.c.l.b16 %v1109
  %v1211 = vunpack.c.l.b16 %v1110
  %v1212 = vunpack.c.l.b16 %v1111
  %v1213 = vunpack.c.l.b16 %v1112
  %v1214 = vunpack.c.l.b16 %v1113
  %v1215 = vunpack.c.l.b16 %v1114
  %v1216 = vunpack.c.l.b16 %v1115
  %v1217 = vunpack.c.l.b16 %v1116
  %v1218 = vunpack.c.l.b16 %v1117
  %v1219 = vunpack.c.l.b16 %v1118
  %v1220 = vunpack.c.l.b16 %v1119
  %v1221 = vpack.c.b16 %v1174, %v1173
  %v1222 = vpack.c.b16 %v1176, %v1175
  %v1223 = vpack.c.b16 %v1178, %v1177
  %v1224 = vpack.c.b16 %v1180, %v1179
  %v1225 = vpack.c.b16 %v1182, %v1181
  %v1226 = vpack.c.b16 %v1184, %v1183
  %v1227 = vpack.c.b16 %v1186, %v1185
  %v1228 = vpack.c.b16 %v1188, %v1187
  %v1229 = vpack.c.b16 %v1190, %v1189
  %v1230 = vpack.c.b16 %v1192, %v1191
  %v1231 = vpack.c.b16 %v1194, %v1193
  %v1232 = vpack.c.b16 %v1196, %v1195
  %v1233 = vpack.c.b16 %v1198, %v1197
  %v1234 = vpack.c.b16 %v1200, %v1199
  %v1235 = vpack.c.b16 %v1202, %v1201
  %v1236 = vpack.c.b16 %v1204, %v1203
  %v1237 = vpack.c.b16 %v1206, %v1205
  %v1238 = vpack.c.b16 %v1208, %v1207
  %v1239 = vpack.c.b16 %v1210, %v1209
  %v1240 = vpack.c.b16 %v1212, %v1211
  %v1241 = vpack.c.b16 %v1214, %v1213
  %v1242 = vpack.c.b16 %v1216, %v1215
  %v1243 = vpack.c.b16 %v1218, %v1217
  %v1244 = vpack.c.b16 %v1220, %v1219
  %1269 = vmatpush.bf16.msra.mxu0 %v1228
  %1270 = vmatpush.bf16.msra.mxu0 %v1227
  %1271 = vmatpush.bf16.msra.mxu0 %v1226
  %1272 = vmatpush.bf16.msra.mxu0 %v1225
  %1273 = vmatpush.bf16.msra.mxu0 %v1224
  %1274 = vmatpush.bf16.msra.mxu0 %v1223
  %1275 = vmatpush.bf16.msra.mxu0 %v1222
  %1276 = vmatpush.bf16.msra.mxu0 %v1221
  %1277 = vmatmul.bf16.gmra.mxu0 %v1065
  %v1278 = vpop.f32.mrf.mxu0
  %v1279 = vadd.f32 %v1123, %v1278
  %v1280 = vpop.f32.mrf.mxu0
  %v1281 = vadd.f32 %v1123, %v1280
  %1282 = vmatmul.bf16.gmra.mxu0 %v1068
  %v1283 = vpop.f32.mrf.mxu0
  %v1284 = vadd.f32 %v1123, %v1283
  %v1285 = vpop.f32.mrf.mxu0
  %v1286 = vadd.f32 %v1123, %v1285
  %1287 = vdwg.mxu0
  %1288 = vmatpush.bf16.msra.mxu0 %v1236
  %1289 = vmatpush.bf16.msra.mxu0 %v1235
  %1290 = vmatpush.bf16.msra.mxu0 %v1234
  %1291 = vmatpush.bf16.msra.mxu0 %v1233
  %1292 = vmatpush.bf16.msra.mxu0 %v1232
  %1293 = vmatpush.bf16.msra.mxu0 %v1231
  %1294 = vmatpush.bf16.msra.mxu0 %v1230
  %1295 = vmatpush.bf16.msra.mxu0 %v1229
  %1296 = vmatmul.bf16.gmra.mxu0 %v1066
  %v1297 = vpop.f32.mrf.mxu0
  %v1298 = vadd.f32 %v1279, %v1297
  %v1299 = vpop.f32.mrf.mxu0
  %v1300 = vadd.f32 %v1281, %v1299
  %1301 = vmatmul.bf16.gmra.mxu0 %v1069
  %v1302 = vpop.f32.mrf.mxu0
  %v1303 = vadd.f32 %v1284, %v1302
  %v1304 = vpop.f32.mrf.mxu0
  %v1305 = vadd.f32 %v1286, %v1304
  %1306 = vdwg.mxu0
  %1307 = vmatpush.bf16.msra.mxu0 %v1244
  %1308 = vmatpush.bf16.msra.mxu0 %v1243
  %1309 = vmatpush.bf16.msra.mxu0 %v1242
  %1310 = vmatpush.bf16.msra.mxu0 %v1241
  %1311 = vmatpush.bf16.msra.mxu0 %v1240
  %1312 = vmatpush.bf16.msra.mxu0 %v1239
  %1313 = vmatpush.bf16.msra.mxu0 %v1238
  %1314 = vmatpush.bf16.msra.mxu0 %v1237
  %1315 = vmatmul.bf16.gmra.mxu0 %v1067
  %v1316 = vpop.f32.mrf.mxu0
  %v1317 = vadd.f32 %v1298, %v1316
  %v1318 = vpop.f32.mrf.mxu0
  %v1319 = vadd.f32 %v1300, %v1318
  %1320 = vmatmul.bf16.gmra.mxu0 %v1070
  %v1321 = vpop.f32.mrf.mxu0
  %v1322 = vadd.f32 %v1303, %v1321
  %v1323 = vpop.f32.mrf.mxu0
  %v1324 = vadd.f32 %v1305, %v1323
  %1325 = vdwg.mxu0
  %v1326 = vadd.f32 %v1317, %v748
  %v1327 = vadd.f32 %v1319, %v749
  %v1328 = vadd.f32 %v1322, %v750
  %v1329 = vadd.f32 %v1324, %v751
  %v1330 = vmax.f32 %v1326, 0.0
  %v1331 = vmax.f32 %v1327, 0.0
  %v1332 = vmax.f32 %v1328, 0.0
  %v1333 = vmax.f32 %v1329, 0.0
  %s1334 = scalar_lea.vmem %s2, 64
  %v1335 = vld [vmem:[%s1334] sm:$0xf]
  %v1336 = vld [vmem:[%s1334 + $0x4] sm:$0xf]
  %v1337 = vld [vmem:[%s1334 + $0x8] sm:$0xf]
  %v1338 = vld [vmem:[%s1334 + $0xc] sm:$0xf]
  %v1339 = vld [vmem:[%s1334 + $0x10] sm:$0xf]
  %v1340 = vld [vmem:[%s1334 + $0x14] sm:$0xf]
  %v1341 = vld [vmem:[%s1334 + $0x18] sm:$0xf]
  %v1342 = vld [vmem:[%s1334 + $0x1c] sm:$0xf]
  %v1343 = vld [vmem:[%s1334 + $0x20] sm:$0xf]
  %v1344 = vld [vmem:[%s1334 + $0x24] sm:$0xf]
  %v1345 = vld [vmem:[%s1334 + $0x28] sm:$0xf]
  %v1346 = vld [vmem:[%s1334 + $0x2c] sm:$0xf]
  %v1347 = vld [vmem:[%s1334 + $0x30] sm:$0xf]
  %v1348 = vld [vmem:[%s1334 + $0x34] sm:$0xf]
  %v1349 = vld [vmem:[%s1334 + $0x38] sm:$0xf]
  %v1350 = vld [vmem:[%s1334 + $0x3c] sm:$0xf]
  %v1351 = vpack.c.bf16 %v1331, %v1330
  %v1352 = vpack.c.bf16 %v1333, %v1332
  %s1353 = scalar_lea.vmem %s2, 128
  %v1354 = vld [vmem:[%s1353] sm:$0xf]
  %v1355 = vld [vmem:[%s1353 + $0x4] sm:$0xf]
  %v1356 = vld [vmem:[%s1353 + $0x8] sm:$0xf]
  %v1357 = vld [vmem:[%s1353 + $0xc] sm:$0xf]
  %v1358 = vld [vmem:[%s1353 + $0x10] sm:$0xf]
  %v1359 = vld [vmem:[%s1353 + $0x14] sm:$0xf]
  %v1360 = vld [vmem:[%s1353 + $0x18] sm:$0xf]
  %v1361 = vld [vmem:[%s1353 + $0x1c] sm:$0xf]
  %v1362 = vld [vmem:[%s1353 + $0x20] sm:$0xf]
  %v1363 = vld [vmem:[%s1353 + $0x24] sm:$0xf]
  %v1364 = vld [vmem:[%s1353 + $0x28] sm:$0xf]
  %v1365 = vld [vmem:[%s1353 + $0x2c] sm:$0xf]
  %v1366 = vld [vmem:[%s1353 + $0x30] sm:$0xf]
  %v1367 = vld [vmem:[%s1353 + $0x34] sm:$0xf]
  %v1368 = vld [vmem:[%s1353 + $0x38] sm:$0xf]
  %v1369 = vld [vmem:[%s1353 + $0x3c] sm:$0xf]
  %v1386 = vunpack.c.l.b16 %v1354
  %v1387 = vunpack.c.l.b16 %v1355
  %v1388 = vunpack.c.l.b16 %v1356
  %v1389 = vunpack.c.l.b16 %v1357
  %v1390 = vunpack.c.l.b16 %v1358
  %v1391 = vunpack.c.l.b16 %v1359
  %v1392 = vunpack.c.l.b16 %v1360
  %v1393 = vunpack.c.l.b16 %v1361
  %v1394 = vunpack.c.l.b16 %v1362
  %v1395 = vunpack.c.l.b16 %v1363
  %v1396 = vunpack.c.l.b16 %v1364
  %v1397 = vunpack.c.l.b16 %v1365
  %v1398 = vunpack.c.l.b16 %v1366
  %v1399 = vunpack.c.l.b16 %v1367
  %v1400 = vunpack.c.l.b16 %v1368
  %v1401 = vunpack.c.l.b16 %v1369
  %v1402 = vpack.c.b16 %v1387, %v1386
  %v1403 = vpack.c.b16 %v1389, %v1388
  %v1404 = vpack.c.b16 %v1391, %v1390
  %v1405 = vpack.c.b16 %v1393, %v1392
  %v1406 = vpack.c.b16 %v1395, %v1394
  %v1407 = vpack.c.b16 %v1397, %v1396
  %v1408 = vpack.c.b16 %v1399, %v1398
  %v1409 = vpack.c.b16 %v1401, %v1400
  %1418 = vmatpush.bf16.msra.mxu0 %v1409
  %1419 = vmatpush.bf16.msra.mxu0 %v1408
  %1420 = vmatpush.bf16.msra.mxu0 %v1407
  %1421 = vmatpush.bf16.msra.mxu0 %v1406
  %1422 = vmatpush.bf16.msra.mxu0 %v1405
  %1423 = vmatpush.bf16.msra.mxu0 %v1404
  %1424 = vmatpush.bf16.msra.mxu0 %v1403
  %1425 = vmatpush.bf16.msra.mxu0 %v1402
  %1426 = vmatmul.bf16.gmra.mxu0 %v1351
  %v1427 = vpop.f32.mrf.mxu0
  %v1428 = vadd.f32 0.0, %v1427
  %v1429 = vpop.f32.mrf.mxu0
  %v1430 = vadd.f32 0.0, %v1429
  %1431 = vmatmul.bf16.gmra.mxu0 %v1352
  %v1432 = vpop.f32.mrf.mxu0
  %v1433 = vadd.f32 0.0, %v1432
  %v1434 = vpop.f32.mrf.mxu0
  %v1435 = vadd.f32 0.0, %v1434
  %1436 = vdwg.mxu0
  %v1453 = vunpack.c.l.b16 %v1335
  %v1454 = vunpack.c.l.b16 %v1336
  %v1455 = vunpack.c.l.b16 %v1337
  %v1456 = vunpack.c.l.b16 %v1338
  %v1457 = vunpack.c.l.b16 %v1339
  %v1458 = vunpack.c.l.b16 %v1340
  %v1459 = vunpack.c.l.b16 %v1341
  %v1460 = vunpack.c.l.b16 %v1342
  %v1461 = vunpack.c.l.b16 %v1343
  %v1462 = vunpack.c.l.b16 %v1344
  %v1463 = vunpack.c.l.b16 %v1345
  %v1464 = vunpack.c.l.b16 %v1346
  %v1465 = vunpack.c.l.b16 %v1347
  %v1466 = vunpack.c.l.b16 %v1348
  %v1467 = vunpack.c.l.b16 %v1349
  %v1468 = vunpack.c.l.b16 %v1350
  %v1469 = vpack.c.b16 %v1454, %v1453
  %v1470 = vpack.c.b16 %v1456, %v1455
  %v1471 = vpack.c.b16 %v1458, %v1457
  %v1472 = vpack.c.b16 %v1460, %v1459
  %v1473 = vpack.c.b16 %v1462, %v1461
  %v1474 = vpack.c.b16 %v1464, %v1463
  %v1475 = vpack.c.b16 %v1466, %v1465
  %v1476 = vpack.c.b16 %v1468, %v1467
  %1485 = vmatpush.bf16.msra.mxu0 %v1476
  %1486 = vmatpush.bf16.msra.mxu0 %v1475
  %1487 = vmatpush.bf16.msra.mxu0 %v1474
  %1488 = vmatpush.bf16.msra.mxu0 %v1473
  %1489 = vmatpush.bf16.msra.mxu0 %v1472
  %1490 = vmatpush.bf16.msra.mxu0 %v1471
  %1491 = vmatpush.bf16.msra.mxu0 %v1470
  %1492 = vmatpush.bf16.msra.mxu0 %v1469
  %1493 = vmatmul.bf16.gmra.mxu0 %v777
  %v1494 = vpop.f32.mrf.mxu0
  %v1495 = vadd.f32 %v1428, %v1494
  %v1496 = vpop.f32.mrf.mxu0
  %v1497 = vadd.f32 %v1430, %v1496
  %1498 = vmatmul.bf16.gmra.mxu0 %v780
  %v1499 = vpop.f32.mrf.mxu0
  %v1500 = vadd.f32 %v1433, %v1499
  %v1501 = vpop.f32.mrf.mxu0
  %v1502 = vadd.f32 %v1435, %v1501
  %1503 = vdwg.mxu0
  %s1504 = scalar_lea.vmem %s3, 5
  %v1505 = vld [vmem:[%s1504] sm:$0x1]
  %v1507 = vperm.slane %v1505, 0
  %v1509 = vadd.f32 %v1495, %v1507
  %v1510 = vadd.f32 %v1497, %v1507
  %v1511 = vadd.f32 %v1500, %v1507
  %v1512 = vadd.f32 %v1502, %v1507
  %v1513 = vmax.f32 %v1509, 0.0
  %v1514 = vmax.f32 %v1510, 0.0
  %v1515 = vmax.f32 %v1511, 0.0
  %v1516 = vmax.f32 %v1512, 0.0
  %1517 = vst [vmem:[%s4] sm:$0xff] %v1513
  %1518 = vst [vmem:[%s4 + $0x8] sm:$0xff] %v1514
  %1519 = vst [vmem:[%s4 + $0x10] sm:$0xff] %v1515
  %1520 = vst [vmem:[%s4 + $0x18] sm:$0xff] %v1516
  // Predicated region
  $region18: #{_tree_forward_nchw.1} parent=0 // pred_check
    _
  $region19: #{_tree_forward_nchw.1} parent=0 // pred_check_branch
    %1522 = sbr.rel (0) target = $region21
  $region20: #{_tree_forward_nchw.1} parent=0 // pred_region
    _
  $region21: #{_tree_forward_nchw.1} parent=0 // pred_fallthru
    _
  // Predicated region
  $region22: #{_tree_forward_nchw.1} parent=0 // pred_check
    _
  $region23: #{_tree_forward_nchw.1} parent=0 // pred_check_branch
    %1524 = sbr.rel (0) target = $region25
  $region24: #{_tree_forward_nchw.1} parent=0 // pred_region
    _
  $region25: #{_tree_forward_nchw.1} parent=0 // pred_fallthru
    _

</llo_original>
